<compile_context>
chip_gen: v7x
topology: tpu7x:2x2x1
jax: 0.10.0
libtpu: 0.0.40
codegen_flags: <defaults>
</compile_context>

<pallas_src>
import numpy as np
import jax
import jax.numpy as jnp
from jax.experimental import pallas as pl
from jax.experimental.pallas import tpu as pltpu

# ----------------------------- static config --------------------------------
N_WIRES = 4
D = N_WIRES ** 2            # 16  (n_wires**2 feature size; also 2**n_wires here)
STATE_DIM = 2 ** N_WIRES    # 16
NUM_CLASSES = 4             # upsampling_factor = D / num_classes = 4
UPSAMPLE = D // NUM_CLASSES # 4   (nn.Upsample(scale_factor=4), nearest)
N_LAYER = 3                 # direct-branch unroll depth
IMG = 24                    # 24x24 input -> avg_pool2d(k=6) -> 4x4 -> 16 features
POOL_K = 6
NORM_EPS = 1e-12            # guards ||v||^2 == 0 (all-zero pooled row on first step)


# ----------------------------- gate construction (setup glue, numpy) --------
def _expand_gate(g, wires, n):
    """Embed a 2^k x 2^k gate acting on `wires` into the full 2^n x 2^n unitary.
    torchquantum convention: wire 0 is the most-significant qubit."""
    k = len(wires)
    g = np.asarray(g, np.complex64).reshape((2,) * (2 * k))
    psi = np.eye(2 ** n, dtype=np.complex64).reshape((2,) * n + (2 ** n,))
    psi = np.tensordot(g, psi, axes=(list(range(k, 2 * k)), list(wires)))
    current = list(wires) + [w for w in range(n) if w not in wires]
    order = [current.index(w) for w in range(n)] + [n]
    return np.transpose(psi, order).reshape(2 ** n, 2 ** n)


def _rx(t):
    c, s = np.cos(t / 2), np.sin(t / 2)
    return np.array([[c, -1j * s], [-1j * s, c]], np.complex64)


def _ry(t):
    c, s = np.cos(t / 2), np.sin(t / 2)
    return np.array([[c, -s], [s, c]], np.complex64)


def _rz(t):
    return np.array([[np.exp(-1j * t / 2), 0], [0, np.exp(1j * t / 2)]], np.complex64)


def _crx(t):
    m = np.eye(4, dtype=np.complex64)
    m[2:, 2:] = _rx(t)
    return m


_H = (1.0 / np.sqrt(2.0)) * np.array([[1, 1], [1, -1]], np.complex64)
_SX = 0.5 * np.array([[1 + 1j, 1 - 1j], [1 - 1j, 1 + 1j]], np.complex64)
_CNOT = np.array([[1, 0, 0, 0], [0, 1, 0, 0], [0, 0, 0, 1], [0, 0, 1, 0]], np.complex64)


def build_circuit_unitary():
    """Full fixed unitary of QFCModel.QLayer (n_wires=4) with deterministic params."""
    # TODO(synk): tq.RandomLayer(n_ops=50, seed=1111)'s exact op sequence requires
    # torchquantum; replaced by a deterministic Haar-random 16x16 unitary (same role:
    # a fixed entangling layer applied before the trainable gates).
    rng = np.random.RandomState(1111)
    a = rng.randn(STATE_DIM, STATE_DIM) + 1j * rng.randn(STATE_DIM, STATE_DIM)
    q, r = np.linalg.qr(a)
    q = q * (np.diag(r) / np.abs(np.diag(r)))
    u = q.astype(np.complex64)

    # Trainable rotation params, deterministic init in [-pi, pi).
    prng = np.random.RandomState(0)
    th_rx, th_ry, th_rz, th_crx = prng.uniform(-np.pi, np.pi, size=4)

    # gate_set_length == 1 for n_wires == 4:
    gates = [
        (_rx(th_rx), [0]),
        (_ry(th_ry), [1]),
        (_rz(th_rz), [3]),
        (_crx(th_crx), [0, 2]),
        (_H, [3]),
        (_SX, [2]),
        (_CNOT, [3, 0]),
    ]
    for g, wires in gates:
        u = _expand_gate(g, wires, N_WIRES) @ u
    return u


def build_measure_upsample_matrix():
    """Zrep[j, m] = PauliZ sign of wire (m // UPSAMPLE) for basis state j.
    probs @ Zrep == nearest-upsample(MeasureAll(PauliZ), UPSAMPLE)."""
    zsign = np.zeros((STATE_DIM, N_WIRES), np.float32)
    for j in range(STATE_DIM):
        for k in range(N_WIRES):
            bit = (j >> (N_WIRES - 1 - k)) & 1
            zsign[j, k] = 1.0 - 2.0 * bit
    zrep = np.zeros((STATE_DIM, D), np.float32)
    for m in range(D):
        zrep[:, m] = zsign[:, m // UPSAMPLE]
    return zrep


def build_pool_matrix():
    """avg_pool2d(kernel=6, stride=6) over a 24x24 single-channel image as a matmul."""
    p = np.zeros((IMG * IMG, D), np.float32)
    for i in range(4):
        for j in range(4):
            o = i * 4 + j
            for di in range(POOL_K):
                for dj in range(POOL_K):
                    p[(i * POOL_K + di) * IMG + (j * POOL_K + dj), o] = 1.0 / (POOL_K * POOL_K)
    return p


# ----------------------------- Pallas kernel ---------------------------------
def qdeq_kernel(xf_ref, pool_ref, ucat_ref, zrepT_ref, w_ref, b_ref,
                zf_ref, zp1_ref, pred_ref):
    # xf    : (TB, 576)  batch-major flattened image tile (the streamed HBM operand)
    # pool  : (576, 16)  avg-pool expressed as a matmul
    # ucat  : (32, 16)   [Re(U); Im(U)] merged circuit unitary
    # zrepT : (16, 16)   (MeasureAll + Upsample)^T
    # w     : (4, 16), b : (4, 1)   CLS Linear, feature-major
    # Outputs (feature-major, batch tile on the lane axis -> lane-dense stores):
    #   zf (16, TB), zp1 (16, TB), pred (4, TB)
    u_bm = jnp.dot(xf_ref[...], pool_ref[...],
                   preferred_element_type=jnp.float32)          # ImgFilter, (TB, 16)
    u = jnp.transpose(u_bm)                                     # (16, TB), small XLU transpose
    ucat = ucat_ref[...]
    zrepT = zrepT_ref[...]

    def step(z):
        v = z + u                                               # z.squeeze() + injection
        nrm2 = jnp.sum(v * v, axis=0, keepdims=True)            # ||v||^2, (1, TB)
        inv = pl.reciprocal(nrm2 + NORM_EPS, approx=True)       # EUP slot; eps avoids 0-div
        ab = jnp.dot(ucat, v, preferred_element_type=jnp.float32)   # [Re(Uv); Im(Uv)], (32, TB)
        re = ab[:STATE_DIM]
        im = ab[STATE_DIM:]
        probs_un = re * re + im * im                            # |U v|^2 (unnormalized)
        zn = jnp.dot(zrepT, probs_un,
                     preferred_element_type=jnp.float32)        # MeasureAll + Upsample
        return zn * inv                                         # deferred 1/||v||^2  (== |U psi|^2 path)

    z = jnp.zeros_like(u)
    for _ in range(N_LAYER):          # direct branch: z1s = func(z1s, u1s), n_layer times
        z = step(z)
    zf_ref[...] = z                   # new_z1s / core_out
    zp1_ref[...] = step(z)            # extra eval for the residual diagnostic

    # TODO(synk): VariationalDropout (iodrop) definition unavailable; eval-mode identity assumed.
    h = jnp.maximum(z, 0.0)           # CLS: ReLU
    pred_ref[...] = jnp.dot(w_ref[...], h,
                            preferred_element_type=jnp.float32) + b_ref[...]


def _round_up(x, m):
    return (x + m - 1) // m * m


def qdeq_forward(data, target, pool, ucat, zrepT, w, b_col, *, batch_tile=1024):
    """Equivalent of QDEQCircuit.forward(data, target, mems=None) at default kwargs."""
    bsz = data.shape[0]
    x_flat = data.reshape(bsz, IMG * IMG).astype(jnp.float32)   # NCHW (B,1,24,24) -> (B, 576)

    # Batch tile: multiple of 128 (lane-dense feature-major outputs), capped by the
    # requested tile (sweep 512-2048 on real workloads); pad the batch to a multiple.
    tb = _round_up(min(batch_tile, _round_up(bsz, 128)), 128)
    bpad = _round_up(bsz, tb)
    if bpad != bsz:
        x_flat = jnp.pad(x_flat, ((0, bpad - bsz), (0, 0)))     # zero rows are harmless (see eps)
    grid = (bpad // tb,)

    const2 = lambda i: (0, 0)  # constants: fetched once, VMEM-resident across the batch grid
    zf_fm, zp1_fm, pred_fm = pl.pallas_call(
        qdeq_kernel,
        out_shape=(
            jax.ShapeDtypeStruct((D, bpad), jnp.float32),
            jax.ShapeDtypeStruct((D, bpad), jnp.float32),
            jax.ShapeDtypeStruct((NUM_CLASSES, bpad), jnp.float32),
        ),
        grid=grid,
        in_specs=[
            pl.BlockSpec((tb, IMG * IMG), lambda i: (i, 0)),          # streamed image tiles
            pl.BlockSpec((IMG * IMG, D), const2),                     # pool
            pl.BlockSpec((2 * STATE_DIM, STATE_DIM), const2),         # [Re(U); Im(U)]
            pl.BlockSpec((STATE_DIM, D), const2),                     # Zrep^T
            pl.BlockSpec((NUM_CLASSES, D), const2),                   # W
            pl.BlockSpec((NUM_CLASSES, 1), const2),                   # b
        ],
        out_specs=(
            pl.BlockSpec((D, tb), lambda i: (0, i)),
            pl.BlockSpec((D, tb), lambda i: (0, i)),
            pl.BlockSpec((NUM_CLASSES, tb), lambda i: (0, i)),
        ),
        compiler_params=pltpu.CompilerParams(
            dimension_semantics=("parallel",),                        # shard batch over TCs (v7x)
        ),
    )(x_flat, pool, ucat, zrepT, w, b_col)

    # strip batch padding, back to batch-major for the (tiny) epilogue
    zf = zf_fm[:, :bsz].T        # (B, 16)
    zp1 = zp1_fm[:, :bsz].T      # (B, 16)
    pred = pred_fm[:, :bsz].T    # (B, NUM_CLASSES)

    # ---- glue (matches the torch epilogue) ----
    # residual: torch.norm(dim=1) reduces over z1s's singleton dim (bsz,1,16) -> elementwise |.|
    residual = jnp.mean(jnp.abs(zp1 - zf) / (jnp.abs(zf) + 1e-9))

    jac_loss = jnp.zeros((1, 1), jnp.float32)       # torch.tensor(0.0).view(-1, 1)
    sradius = jnp.zeros((bsz, 1), jnp.float32)

    # CrossEntropyLoss(pred, target) + top-1 accuracy
    logz = jax.scipy.special.logsumexp(pred, axis=1)
    loss = jnp.mean(logz - pred[jnp.arange(bsz), target])
    acc = jnp.mean((jnp.argmax(pred, axis=1) == target).astype(jnp.float32))
    return [loss, acc, residual, jac_loss, sradius]


# ----------------------------- driver ----------------------------------------
if __name__ == "__main__":
    key = jax.random.PRNGKey(0)
    k_data, k_w, k_b = jax.random.split(key, 3)

    B = 2
    data = jax.random.normal(k_data, (B, 1, IMG, IMG), dtype=jnp.float32)  # NCHW, C=1
    target = jnp.array([1, 3], dtype=jnp.int32)

    # Deterministic parameter / constant construction (setup glue).
    U = build_circuit_unitary()
    ucat = jnp.asarray(np.concatenate([np.real(U), np.imag(U)], axis=0), jnp.float32)  # (32, 16)
    zrepT = jnp.asarray(build_measure_upsample_matrix().T, jnp.float32)                # (16, 16)
    pool = jnp.asarray(build_pool_matrix(), jnp.float32)                               # (576, 16)

    # CLS: nn.Linear(16, NUM_CLASSES) with PyTorch-style uniform init, deterministic.
    bound = 1.0 / np.sqrt(D)
    W = jax.random.uniform(k_w, (NUM_CLASSES, D), jnp.float32, -bound, bound)          # (4, 16)
    b_col = jax.random.uniform(k_b, (NUM_CLASSES, 1), jnp.float32, -bound, bound)      # (4, 1)

    loss, acc, residual, jac_loss, sradius = qdeq_forward(
        data, target, pool, ucat, zrepT, W, b_col)

    jax.block_until_ready(loss)
    jax.block_until_ready(residual)
    jax.block_until_ready(sradius)
    assert jnp.isfinite(loss) and jnp.isfinite(residual)
    assert jac_loss.shape == (1, 1) and sradius.shape == (B, 1)
    print("KERNEL_OK")
</pallas_src>

<mosaic_0001>
module attributes {stable_mosaic.version = 11 : i64} {
  func.func @qdeq_kernel(%arg0: i32, %arg1: memref<128x576xf32, #tpu.memory_space<vmem>>, %arg2: memref<576x16xf32, #tpu.memory_space<vmem>>, %arg3: memref<32x16xf32, #tpu.memory_space<vmem>>, %arg4: memref<16x16xf32, #tpu.memory_space<vmem>>, %arg5: memref<4x16xf32, #tpu.memory_space<vmem>>, %arg6: memref<4x1xf32, #tpu.memory_space<vmem>>, %arg7: memref<16x128xf32, #tpu.memory_space<vmem>>, %arg8: memref<16x128xf32, #tpu.memory_space<vmem>>, %arg9: memref<4x128xf32, #tpu.memory_space<vmem>>) attributes {dimension_semantics = [#tpu.dimension_semantics<parallel>], iteration_bounds = array<i64: 1>, scalar_prefetch = 0 : i64, scratch_operands = 0 : i64, tpu.core_type = #tpu.core_type<tc>, window_params = [{transform_indices = @transform_0, window_bounds = array<i64: 128, 576>}, {pipeline_mode = #tpu.pipeline_mode<synchronous>, transform_indices = @transform_1, window_bounds = array<i64: 576, 16>}, {pipeline_mode = #tpu.pipeline_mode<synchronous>, transform_indices = @transform_2, window_bounds = array<i64: 32, 16>}, {pipeline_mode = #tpu.pipeline_mode<synchronous>, transform_indices = @transform_3, window_bounds = array<i64: 16, 16>}, {pipeline_mode = #tpu.pipeline_mode<synchronous>, transform_indices = @transform_4, window_bounds = array<i64: 4, 16>}, {pipeline_mode = #tpu.pipeline_mode<synchronous>, transform_indices = @transform_5, window_bounds = array<i64: 4, 1>}, {transform_indices = @transform_6, window_bounds = array<i64: 16, 128>}, {transform_indices = @transform_7, window_bounds = array<i64: 16, 128>}, {transform_indices = @transform_8, window_bounds = array<i64: 4, 128>}]} {
    %c0 = arith.constant 0 : index
    %c0_0 = arith.constant 0 : index
    %0 = vector.load %arg1[%c0, %c0_0] : memref<128x576xf32, #tpu.memory_space<vmem>>, vector<128x576xf32>
    %c0_1 = arith.constant 0 : index
    %c0_2 = arith.constant 0 : index
    %1 = vector.load %arg2[%c0_1, %c0_2] : memref<576x16xf32, #tpu.memory_space<vmem>>, vector<576x16xf32>
    %cst = arith.constant dense<0.000000e+00> : vector<128x16xf32>
    %2 = tpu.matmul %0, %1, %cst {dimension_numbers = #tpu.dot_dimension_numbers<[1], [0], [0], [1], [0, 0, 1, 1], [], []>} : vector<128x576xf32>, vector<576x16xf32>, vector<128x16xf32> -> vector<128x16xf32>
    %3 = tpu.transpose %2, [1, 0] : vector<128x16xf32> -> vector<16x128xf32>
    %c0_3 = arith.constant 0 : index
    %c0_4 = arith.constant 0 : index
    %4 = vector.load %arg3[%c0_3, %c0_4] : memref<32x16xf32, #tpu.memory_space<vmem>>, vector<32x16xf32>
    %c0_5 = arith.constant 0 : index
    %c0_6 = arith.constant 0 : index
    %5 = vector.load %arg4[%c0_5, %c0_6] : memref<16x16xf32, #tpu.memory_space<vmem>>, vector<16x16xf32>
    %cst_7 = arith.constant 0.000000e+00 : f32
    %6 = vector.broadcast %cst_7 : f32 to vector<16x128xf32>
    %7 = arith.addf %6, %3 : vector<16x128xf32>
    %8 = arith.mulf %7, %7 : vector<16x128xf32>
    %cst_8 = arith.constant dense<0.000000e+00> : vector<128xf32>
    %9 = vector.multi_reduction <add>, %8, %cst_8 [0] : vector<16x128xf32> to vector<128xf32>
    %10 = vector.shape_cast %9 : vector<128xf32> to vector<1x128xf32>
    %cst_9 = arith.constant 9.99999996E-13 : f32
    %11 = vector.broadcast %cst_9 : f32 to vector<1x128xf32>
    %12 = arith.addf %10, %11 : vector<1x128xf32>
    %13 = tpu.reciprocal %12 {approx = true} : vector<1x128xf32> -> vector<1x128xf32>
    %cst_10 = arith.constant dense<0.000000e+00> : vector<32x128xf32>
    %14 = tpu.matmul %4, %7, %cst_10 {dimension_numbers = #tpu.dot_dimension_numbers<[1], [0], [0], [1], [0, 0, 1, 1], [], []>} : vector<32x16xf32>, vector<16x128xf32>, vector<32x128xf32> -> vector<32x128xf32>
    %15 = vector.extract_strided_slice %14 {offsets = [0, 0], sizes = [16, 128], strides = [1, 1]} : vector<32x128xf32> to vector<16x128xf32>
    %16 = vector.extract_strided_slice %14 {offsets = [16, 0], sizes = [16, 128], strides = [1, 1]} : vector<32x128xf32> to vector<16x128xf32>
    %17 = arith.mulf %15, %15 : vector<16x128xf32>
    %18 = arith.mulf %16, %16 : vector<16x128xf32>
    %19 = arith.addf %17, %18 : vector<16x128xf32>
    %cst_11 = arith.constant dense<0.000000e+00> : vector<16x128xf32>
    %20 = tpu.matmul %5, %19, %cst_11 {dimension_numbers = #tpu.dot_dimension_numbers<[1], [0], [0], [1], [0, 0, 1, 1], [], []>} : vector<16x16xf32>, vector<16x128xf32>, vector<16x128xf32> -> vector<16x128xf32>
    %21 = vector.broadcast %13 : vector<1x128xf32> to vector<16x128xf32>
    %22 = arith.mulf %20, %21 : vector<16x128xf32>
    %23 = arith.addf %22, %3 : vector<16x128xf32>
    %24 = arith.mulf %23, %23 : vector<16x128xf32>
    %cst_12 = arith.constant dense<0.000000e+00> : vector<128xf32>
    %25 = vector.multi_reduction <add>, %24, %cst_12 [0] : vector<16x128xf32> to vector<128xf32>
    %26 = vector.shape_cast %25 : vector<128xf32> to vector<1x128xf32>
    %cst_13 = arith.constant 9.99999996E-13 : f32
    %27 = vector.broadcast %cst_13 : f32 to vector<1x128xf32>
    %28 = arith.addf %26, %27 : vector<1x128xf32>
    %29 = tpu.reciprocal %28 {approx = true} : vector<1x128xf32> -> vector<1x128xf32>
    %cst_14 = arith.constant dense<0.000000e+00> : vector<32x128xf32>
    %30 = tpu.matmul %4, %23, %cst_14 {dimension_numbers = #tpu.dot_dimension_numbers<[1], [0], [0], [1], [0, 0, 1, 1], [], []>} : vector<32x16xf32>, vector<16x128xf32>, vector<32x128xf32> -> vector<32x128xf32>
    %31 = vector.extract_strided_slice %30 {offsets = [0, 0], sizes = [16, 128], strides = [1, 1]} : vector<32x128xf32> to vector<16x128xf32>
    %32 = vector.extract_strided_slice %30 {offsets = [16, 0], sizes = [16, 128], strides = [1, 1]} : vector<32x128xf32> to vector<16x128xf32>
    %33 = arith.mulf %31, %31 : vector<16x128xf32>
    %34 = arith.mulf %32, %32 : vector<16x128xf32>
    %35 = arith.addf %33, %34 : vector<16x128xf32>
    %cst_15 = arith.constant dense<0.000000e+00> : vector<16x128xf32>
    %36 = tpu.matmul %5, %35, %cst_15 {dimension_numbers = #tpu.dot_dimension_numbers<[1], [0], [0], [1], [0, 0, 1, 1], [], []>} : vector<16x16xf32>, vector<16x128xf32>, vector<16x128xf32> -> vector<16x128xf32>
    %37 = vector.broadcast %29 : vector<1x128xf32> to vector<16x128xf32>
    %38 = arith.mulf %36, %37 : vector<16x128xf32>
    %39 = arith.addf %38, %3 : vector<16x128xf32>
    %40 = arith.mulf %39, %39 : vector<16x128xf32>
    %cst_16 = arith.constant dense<0.000000e+00> : vector<128xf32>
    %41 = vector.multi_reduction <add>, %40, %cst_16 [0] : vector<16x128xf32> to vector<128xf32>
    %42 = vector.shape_cast %41 : vector<128xf32> to vector<1x128xf32>
    %cst_17 = arith.constant 9.99999996E-13 : f32
    %43 = vector.broadcast %cst_17 : f32 to vector<1x128xf32>
    %44 = arith.addf %42, %43 : vector<1x128xf32>
    %45 = tpu.reciprocal %44 {approx = true} : vector<1x128xf32> -> vector<1x128xf32>
    %cst_18 = arith.constant dense<0.000000e+00> : vector<32x128xf32>
    %46 = tpu.matmul %4, %39, %cst_18 {dimension_numbers = #tpu.dot_dimension_numbers<[1], [0], [0], [1], [0, 0, 1, 1], [], []>} : vector<32x16xf32>, vector<16x128xf32>, vector<32x128xf32> -> vector<32x128xf32>
    %47 = vector.extract_strided_slice %46 {offsets = [0, 0], sizes = [16, 128], strides = [1, 1]} : vector<32x128xf32> to vector<16x128xf32>
    %48 = vector.extract_strided_slice %46 {offsets = [16, 0], sizes = [16, 128], strides = [1, 1]} : vector<32x128xf32> to vector<16x128xf32>
    %49 = arith.mulf %47, %47 : vector<16x128xf32>
    %50 = arith.mulf %48, %48 : vector<16x128xf32>
    %51 = arith.addf %49, %50 : vector<16x128xf32>
    %cst_19 = arith.constant dense<0.000000e+00> : vector<16x128xf32>
    %52 = tpu.matmul %5, %51, %cst_19 {dimension_numbers = #tpu.dot_dimension_numbers<[1], [0], [0], [1], [0, 0, 1, 1], [], []>} : vector<16x16xf32>, vector<16x128xf32>, vector<16x128xf32> -> vector<16x128xf32>
    %53 = vector.broadcast %45 : vector<1x128xf32> to vector<16x128xf32>
    %54 = arith.mulf %52, %53 : vector<16x128xf32>
    %c0_20 = arith.constant 0 : index
    %c0_21 = arith.constant 0 : index
    %55 = vector.load %arg7[%c0_20, %c0_21] : memref<16x128xf32, #tpu.memory_space<vmem>>, vector<16x128xf32>
    tpu.vector_store %arg7[%c0_20, %c0_21], %54 {strides = array<i32>} : memref<16x128xf32, #tpu.memory_space<vmem>>, vector<16x128xf32>,
    %56 = arith.addf %54, %3 : vector<16x128xf32>
    %57 = arith.mulf %56, %56 : vector<16x128xf32>
    %cst_22 = arith.constant dense<0.000000e+00> : vector<128xf32>
    %58 = vector.multi_reduction <add>, %57, %cst_22 [0] : vector<16x128xf32> to vector<128xf32>
    %59 = vector.shape_cast %58 : vector<128xf32> to vector<1x128xf32>
    %cst_23 = arith.constant 9.99999996E-13 : f32
    %60 = vector.broadcast %cst_23 : f32 to vector<1x128xf32>
    %61 = arith.addf %59, %60 : vector<1x128xf32>
    %62 = tpu.reciprocal %61 {approx = true} : vector<1x128xf32> -> vector<1x128xf32>
    %cst_24 = arith.constant dense<0.000000e+00> : vector<32x128xf32>
    %63 = tpu.matmul %4, %56, %cst_24 {dimension_numbers = #tpu.dot_dimension_numbers<[1], [0], [0], [1], [0, 0, 1, 1], [], []>} : vector<32x16xf32>, vector<16x128xf32>, vector<32x128xf32> -> vector<32x128xf32>
    %64 = vector.extract_strided_slice %63 {offsets = [0, 0], sizes = [16, 128], strides = [1, 1]} : vector<32x128xf32> to vector<16x128xf32>
    %65 = vector.extract_strided_slice %63 {offsets = [16, 0], sizes = [16, 128], strides = [1, 1]} : vector<32x128xf32> to vector<16x128xf32>
    %66 = arith.mulf %64, %64 : vector<16x128xf32>
    %67 = arith.mulf %65, %65 : vector<16x128xf32>
    %68 = arith.addf %66, %67 : vector<16x128xf32>
    %cst_25 = arith.constant dense<0.000000e+00> : vector<16x128xf32>
    %69 = tpu.matmul %5, %68, %cst_25 {dimension_numbers = #tpu.dot_dimension_numbers<[1], [0], [0], [1], [0, 0, 1, 1], [], []>} : vector<16x16xf32>, vector<16x128xf32>, vector<16x128xf32> -> vector<16x128xf32>
    %70 = vector.broadcast %62 : vector<1x128xf32> to vector<16x128xf32>
    %71 = arith.mulf %69, %70 : vector<16x128xf32>
    %c0_26 = arith.constant 0 : index
    %c0_27 = arith.constant 0 : index
    %72 = vector.load %arg8[%c0_26, %c0_27] : memref<16x128xf32, #tpu.memory_space<vmem>>, vector<16x128xf32>
    tpu.vector_store %arg8[%c0_26, %c0_27], %71 {strides = array<i32>} : memref<16x128xf32, #tpu.memory_space<vmem>>, vector<16x128xf32>,
    %cst_28 = arith.constant 0.000000e+00 : f32
    %73 = vector.broadcast %cst_28 : f32 to vector<16x128xf32>
    %74 = arith.maximumf %54, %73 : vector<16x128xf32>
    %c0_29 = arith.constant 0 : index
    %c0_30 = arith.constant 0 : index
    %75 = vector.load %arg5[%c0_29, %c0_30] : memref<4x16xf32, #tpu.memory_space<vmem>>, vector<4x16xf32>
    %cst_31 = arith.constant dense<0.000000e+00> : vector<4x128xf32>
    %76 = tpu.matmul %75, %74, %cst_31 {dimension_numbers = #tpu.dot_dimension_numbers<[1], [0], [0], [1], [0, 0, 1, 1], [], []>} : vector<4x16xf32>, vector<16x128xf32>, vector<4x128xf32> -> vector<4x128xf32>
    %c0_32 = arith.constant 0 : index
    %c0_33 = arith.constant 0 : index
    %77 = vector.load %arg6[%c0_32, %c0_33] : memref<4x1xf32, #tpu.memory_space<vmem>>, vector<4x1xf32>
    %78 = vector.broadcast %77 : vector<4x1xf32> to vector<4x128xf32>
    %79 = arith.addf %76, %78 : vector<4x128xf32>
    %c0_34 = arith.constant 0 : index
    %c0_35 = arith.constant 0 : index
    %80 = vector.load %arg9[%c0_34, %c0_35] : memref<4x128xf32, #tpu.memory_space<vmem>>, vector<4x128xf32>
    tpu.vector_store %arg9[%c0_34, %c0_35], %79 {strides = array<i32>} : memref<4x128xf32, #tpu.memory_space<vmem>>, vector<4x128xf32>,
    return
  }
  func.func @transform_0(%arg0: i32) -> (i32, i32) {
    %c0_i32 = arith.constant 0 : i32
    %c0_i32_0 = arith.constant 0 : i32
    return %arg0, %c0_i32 : i32, i32
  }
  func.func @transform_1(%arg0: i32) -> (i32, i32) {
    %c0_i32 = arith.constant 0 : i32
    %c0_i32_0 = arith.constant 0 : i32
    %c0_i32_1 = arith.constant 0 : i32
    return %c0_i32, %c0_i32_0 : i32, i32
  }
  func.func @transform_2(%arg0: i32) -> (i32, i32) {
    %c0_i32 = arith.constant 0 : i32
    %c0_i32_0 = arith.constant 0 : i32
    %c0_i32_1 = arith.constant 0 : i32
    return %c0_i32, %c0_i32_0 : i32, i32
  }
  func.func @transform_3(%arg0: i32) -> (i32, i32) {
    %c0_i32 = arith.constant 0 : i32
    %c0_i32_0 = arith.constant 0 : i32
    %c0_i32_1 = arith.constant 0 : i32
    return %c0_i32, %c0_i32_0 : i32, i32
  }
  func.func @transform_4(%arg0: i32) -> (i32, i32) {
    %c0_i32 = arith.constant 0 : i32
    %c0_i32_0 = arith.constant 0 : i32
    %c0_i32_1 = arith.constant 0 : i32
    return %c0_i32, %c0_i32_0 : i32, i32
  }
  func.func @transform_5(%arg0: i32) -> (i32, i32) {
    %c0_i32 = arith.constant 0 : i32
    %c0_i32_0 = arith.constant 0 : i32
    %c0_i32_1 = arith.constant 0 : i32
    return %c0_i32, %c0_i32_0 : i32, i32
  }
  func.func @transform_6(%arg0: i32) -> (i32, i32) {
    %c0_i32 = arith.constant 0 : i32
    %c0_i32_0 = arith.constant 0 : i32
    return %c0_i32, %arg0 : i32, i32
  }
  func.func @transform_7(%arg0: i32) -> (i32, i32) {
    %c0_i32 = arith.constant 0 : i32
    %c0_i32_0 = arith.constant 0 : i32
    return %c0_i32, %arg0 : i32, i32
  }
  func.func @transform_8(%arg0: i32) -> (i32, i32) {
    %c0_i32 = arith.constant 0 : i32
    %c0_i32_0 = arith.constant 0 : i32
    return %c0_i32, %arg0 : i32, i32
  }
}

</mosaic_0001>

<llo_original>
// kernel: tpu_custom_call.1
$region0: #{tpu_custom_call.1}
  #allocation0 [shape = 'u32[]', space=smem, size = 0x4, offset = 0x4, fixed_abs, tag = 'smem constant byte address 0x4 - core index']
  #allocation1 [shape = 'u32[144,128]{1,0:T(1,128)}', space=vmem, size = 0x12000, scoped, tag = 'internal scratch']
  %s0 = inlined_call_operand.vmem [shape: f32[128,576], index: 0, kind: input, shape index: {}]
  %s1 = inlined_call_operand.vmem [shape: f32[576,16], index: 1, kind: input, shape index: {}]
  %s2 = inlined_call_operand.vmem [shape: f32[32,16], index: 2, kind: input, shape index: {}]
  %s3 = inlined_call_operand.vmem [shape: f32[16,16], index: 3, kind: input, shape index: {}]
  %s4 = inlined_call_operand.vmem [shape: f32[4,16], index: 4, kind: input, shape index: {}]
  %s5 = inlined_call_operand.vmem [shape: f32[4,1], index: 5, kind: input, shape index: {}]
  %s6 = inlined_call_operand.hbm [shape: f32[16,128], index: 6, kind: output, shape index: {0}]
  %s7 = inlined_call_operand.hbm [shape: f32[16,128], index: 7, kind: output, shape index: {1}]
  %s8 = inlined_call_operand.hbm [shape: f32[4,128], index: 8, kind: output, shape index: {2}]
  %9 = xla_tuple %s6, %s7, %s8
  %s10 = sld [smem:[#allocation0]]
  $region50: #{tpu_custom_call.1} parent=0
    _
  %s12 = ssub.s32 1, %s10
  %s13 = scalar_select 0, %s12, %s10
  $region1: #{tpu_custom_call.1} parent=0
    #allocation2 [shape = 'u8[8192]{0}', space=vmem, size = 0x2000, scoped, tag = 'output window, operand 0, single buffered']
    #allocation3 [shape = 's32[1]{0}', space=sflag, size = 0x4, scoped, tag = 'scoped memory for tpu_custom_call.1']
    #allocation4 [shape = 'u8[8192]{0}', space=vmem, size = 0x2000, scoped, tag = 'output window, operand 1, single buffered']
    #allocation5 [shape = 's32[1]{0}', space=sflag, size = 0x4, scoped, tag = 'scoped memory for tpu_custom_call.1']
    #allocation6 [shape = 'u8[2048]{0}', space=vmem, size = 0x800, scoped, tag = 'output window, operand 2, single buffered']
    %14 = vsyncpa [#allocation3], 0
    %15 = vsyncpa [#allocation5], 0
    // Predicated region
    $region2: #{tpu_custom_call.1} parent=1 // pred_check
      _
    $region3: #{tpu_custom_call.1} parent=1 // pred_check_branch
      %17 = sbr.rel (0) target = $region5
    $region4: #{tpu_custom_call.1} parent=1 // pred_region
      _
    $region5: #{tpu_custom_call.1} parent=1 // pred_fallthru
      _
    // Predicated region
    $region6: #{tpu_custom_call.1} parent=1 // pred_check
      _
    $region7: #{tpu_custom_call.1} parent=1 // pred_check_branch
      %19 = sbr.rel (0) target = $region9
    $region8: #{tpu_custom_call.1} parent=1 // pred_region
      _
    $region9: #{tpu_custom_call.1} parent=1 // pred_fallthru
      _
    // Predicated region
    $region10: #{tpu_custom_call.1} parent=1 // pred_check
      _
    $region11: #{tpu_custom_call.1} parent=1 // pred_check_branch
      %21 = sbr.rel (0) target = $region13
    $region12: #{tpu_custom_call.1} parent=1 // pred_region
      _
    $region13: #{tpu_custom_call.1} parent=1 // pred_fallthru
      _
    // Predicated region
    $region14: #{tpu_custom_call.1} parent=1 // pred_check
      _
    $region15: #{tpu_custom_call.1} parent=1 // pred_check_branch
      %23 = sbr.rel (0) target = $region17
    $region16: #{tpu_custom_call.1} parent=1 // pred_region
      _
    $region17: #{tpu_custom_call.1} parent=1 // pred_fallthru
      _
    // Predicated region
    $region18: #{tpu_custom_call.1} parent=1 // pred_check
      _
    $region19: #{tpu_custom_call.1} parent=1 // pred_check_branch
      %25 = sbr.rel (0) target = $region21
    $region20: #{tpu_custom_call.1} parent=1 // pred_region
      _
    $region21: #{tpu_custom_call.1} parent=1 // pred_fallthru
      _
    // Predicated region
    $region22: #{tpu_custom_call.1} parent=1 // pred_check
      _
    $region23: #{tpu_custom_call.1} parent=1 // pred_check_branch
      %27 = sbr.rel (0) target = $region25
    $region24: #{tpu_custom_call.1} parent=1 // pred_region
      _
    $region25: #{tpu_custom_call.1} parent=1 // pred_fallthru
      _
    %v28 = vld [vmem:[%s0] sm:$0xff]
    %v29 = vld [vmem:[%s0 + $0x8] sm:$0xff]
    %v30 = vld [vmem:[%s0 + $0x10] sm:$0xff]
    %v31 = vld [vmem:[%s0 + $0x18] sm:$0xff]
    %v32 = vld [vmem:[%s0 + $0x20] sm:$0xff]
    %v33 = vld [vmem:[%s0 + $0x28] sm:$0xff]
    %v34 = vld [vmem:[%s0 + $0x30] sm:$0xff]
    %v35 = vld [vmem:[%s0 + $0x38] sm:$0xff]
    %v36 = vld [vmem:[%s0 + $0x40] sm:$0xff]
    %v37 = vld [vmem:[%s0 + $0x48] sm:$0xff]
    %v38 = vld [vmem:[%s0 + $0x50] sm:$0xff]
    %v39 = vld [vmem:[%s0 + $0x58] sm:$0xff]
    %v40 = vld [vmem:[%s0 + $0x60] sm:$0xff]
    %v41 = vld [vmem:[%s0 + $0x68] sm:$0xff]
    %v42 = vld [vmem:[%s0 + $0x70] sm:$0xff]
    %v43 = vld [vmem:[%s0 + $0x78] sm:$0xff]
    %v44 = vld [vmem:[%s0 + $0x80] sm:$0xff]
    %v45 = vld [vmem:[%s0 + $0x88] sm:$0xff]
    %v46 = vld [vmem:[%s0 + $0x90] sm:$0xff]
    %v47 = vld [vmem:[%s0 + $0x98] sm:$0xff]
    %v48 = vld [vmem:[%s0 + $0xa0] sm:$0xff]
    %v49 = vld [vmem:[%s0 + $0xa8] sm:$0xff]
    %v50 = vld [vmem:[%s0 + $0xb0] sm:$0xff]
    %v51 = vld [vmem:[%s0 + $0xb8] sm:$0xff]
    %v52 = vld [vmem:[%s0 + $0xc0] sm:$0xff]
    %v53 = vld [vmem:[%s0 + $0xc8] sm:$0xff]
    %v54 = vld [vmem:[%s0 + $0xd0] sm:$0xff]
    %v55 = vld [vmem:[%s0 + $0xd8] sm:$0xff]
    %v56 = vld [vmem:[%s0 + $0xe0] sm:$0xff]
    %v57 = vld [vmem:[%s0 + $0xe8] sm:$0xff]
    %v58 = vld [vmem:[%s0 + $0xf0] sm:$0xff]
    %v59 = vld [vmem:[%s0 + $0xf8] sm:$0xff]
    %v60 = vld [vmem:[%s0 + $0x100] sm:$0xff]
    %v61 = vld [vmem:[%s0 + $0x108] sm:$0xff]
    %v62 = vld [vmem:[%s0 + $0x110] sm:$0xff]
    %v63 = vld [vmem:[%s0 + $0x118] sm:$0xff]
    %v64 = vld [vmem:[%s0 + $0x120] sm:$0xff]
    %v65 = vld [vmem:[%s0 + $0x128] sm:$0xff]
    %v66 = vld [vmem:[%s0 + $0x130] sm:$0xff]
    %v67 = vld [vmem:[%s0 + $0x138] sm:$0xff]
    %v68 = vld [vmem:[%s0 + $0x140] sm:$0xff]
    %v69 = vld [vmem:[%s0 + $0x148] sm:$0xff]
    %v70 = vld [vmem:[%s0 + $0x150] sm:$0xff]
    %v71 = vld [vmem:[%s0 + $0x158] sm:$0xff]
    %v72 = vld [vmem:[%s0 + $0x160] sm:$0xff]
    %v73 = vld [vmem:[%s0 + $0x168] sm:$0xff]
    %v74 = vld [vmem:[%s0 + $0x170] sm:$0xff]
    %v75 = vld [vmem:[%s0 + $0x178] sm:$0xff]
    %v76 = vld [vmem:[%s0 + $0x180] sm:$0xff]
    %v77 = vld [vmem:[%s0 + $0x188] sm:$0xff]
    %v78 = vld [vmem:[%s0 + $0x190] sm:$0xff]
    %v79 = vld [vmem:[%s0 + $0x198] sm:$0xff]
    %v80 = vld [vmem:[%s0 + $0x1a0] sm:$0xff]
    %v81 = vld [vmem:[%s0 + $0x1a8] sm:$0xff]
    %v82 = vld [vmem:[%s0 + $0x1b0] sm:$0xff]
    %v83 = vld [vmem:[%s0 + $0x1b8] sm:$0xff]
    %v84 = vld [vmem:[%s0 + $0x1c0] sm:$0xff]
    %v85 = vld [vmem:[%s0 + $0x1c8] sm:$0xff]
    %v86 = vld [vmem:[%s0 + $0x1d0] sm:$0xff]
    %v87 = vld [vmem:[%s0 + $0x1d8] sm:$0xff]
    %v88 = vld [vmem:[%s0 + $0x1e0] sm:$0xff]
    %v89 = vld [vmem:[%s0 + $0x1e8] sm:$0xff]
    %v90 = vld [vmem:[%s0 + $0x1f0] sm:$0xff]
    %v91 = vld [vmem:[%s0 + $0x1f8] sm:$0xff]
    %v92 = vld [vmem:[%s0 + $0x200] sm:$0xff]
    %v93 = vld [vmem:[%s0 + $0x208] sm:$0xff]
    %v94 = vld [vmem:[%s0 + $0x210] sm:$0xff]
    %v95 = vld [vmem:[%s0 + $0x218] sm:$0xff]
    %v96 = vld [vmem:[%s0 + $0x220] sm:$0xff]
    %v97 = vld [vmem:[%s0 + $0x228] sm:$0xff]
    %v98 = vld [vmem:[%s0 + $0x230] sm:$0xff]
    %v99 = vld [vmem:[%s0 + $0x238] sm:$0xff]
    %v100 = vld [vmem:[%s0 + $0x240] sm:$0xff]
    %v101 = vld [vmem:[%s0 + $0x248] sm:$0xff]
    %v102 = vld [vmem:[%s0 + $0x250] sm:$0xff]
    %v103 = vld [vmem:[%s0 + $0x258] sm:$0xff]
    %v104 = vld [vmem:[%s0 + $0x260] sm:$0xff]
    %v105 = vld [vmem:[%s0 + $0x268] sm:$0xff]
    %v106 = vld [vmem:[%s0 + $0x270] sm:$0xff]
    %v107 = vld [vmem:[%s0 + $0x278] sm:$0xff]
    %v108 = vld [vmem:[%s1] sm:$0xff]
    %v109 = vld [vmem:[%s1 + $0x8] sm:$0xff]
    %v110 = vld [vmem:[%s1 + $0x10] sm:$0xff]
    %v111 = vld [vmem:[%s1 + $0x18] sm:$0xff]
    %v112 = vld [vmem:[%s1 + $0x20] sm:$0xff]
    %v113 = vld [vmem:[%s1 + $0x28] sm:$0xff]
    %v114 = vld [vmem:[%s1 + $0x30] sm:$0xff]
    %v115 = vld [vmem:[%s1 + $0x38] sm:$0xff]
    %v116 = vld [vmem:[%s1 + $0x40] sm:$0xff]
    %v117 = vld [vmem:[%s1 + $0x48] sm:$0xff]
    %v118 = vld [vmem:[%s1 + $0x50] sm:$0xff]
    %v119 = vld [vmem:[%s1 + $0x58] sm:$0xff]
    %v120 = vld [vmem:[%s1 + $0x60] sm:$0xff]
    %v121 = vld [vmem:[%s1 + $0x68] sm:$0xff]
    %v122 = vld [vmem:[%s1 + $0x70] sm:$0xff]
    %v123 = vld [vmem:[%s1 + $0x78] sm:$0xff]
    %v124 = vld [vmem:[%s1 + $0x80] sm:$0xff]
    %v125 = vld [vmem:[%s1 + $0x88] sm:$0xff]
    %v126 = vld [vmem:[%s1 + $0x90] sm:$0xff]
    %v127 = vld [vmem:[%s1 + $0x98] sm:$0xff]
    %v128 = vld [vmem:[%s1 + $0xa0] sm:$0xff]
    %v129 = vld [vmem:[%s1 + $0xa8] sm:$0xff]
    %v130 = vld [vmem:[%s1 + $0xb0] sm:$0xff]
    %v131 = vld [vmem:[%s1 + $0xb8] sm:$0xff]
    %v132 = vld [vmem:[%s1 + $0xc0] sm:$0xff]
    %v133 = vld [vmem:[%s1 + $0xc8] sm:$0xff]
    %v134 = vld [vmem:[%s1 + $0xd0] sm:$0xff]
    %v135 = vld [vmem:[%s1 + $0xd8] sm:$0xff]
    %v136 = vld [vmem:[%s1 + $0xe0] sm:$0xff]
    %v137 = vld [vmem:[%s1 + $0xe8] sm:$0xff]
    %v138 = vld [vmem:[%s1 + $0xf0] sm:$0xff]
    %v139 = vld [vmem:[%s1 + $0xf8] sm:$0xff]
    %v140 = vld [vmem:[%s1 + $0x100] sm:$0xff]
    %v141 = vld [vmem:[%s1 + $0x108] sm:$0xff]
    %v142 = vld [vmem:[%s1 + $0x110] sm:$0xff]
    %v143 = vld [vmem:[%s1 + $0x118] sm:$0xff]
    %v144 = vld [vmem:[%s1 + $0x120] sm:$0xff]
    %v145 = vld [vmem:[%s1 + $0x128] sm:$0xff]
    %v146 = vld [vmem:[%s1 + $0x130] sm:$0xff]
    %v147 = vld [vmem:[%s1 + $0x138] sm:$0xff]
    %v148 = vld [vmem:[%s1 + $0x140] sm:$0xff]
    %v149 = vld [vmem:[%s1 + $0x148] sm:$0xff]
    %v150 = vld [vmem:[%s1 + $0x150] sm:$0xff]
    %v151 = vld [vmem:[%s1 + $0x158] sm:$0xff]
    %v152 = vld [vmem:[%s1 + $0x160] sm:$0xff]
    %v153 = vld [vmem:[%s1 + $0x168] sm:$0xff]
    %v154 = vld [vmem:[%s1 + $0x170] sm:$0xff]
    %v155 = vld [vmem:[%s1 + $0x178] sm:$0xff]
    %v156 = vld [vmem:[%s1 + $0x180] sm:$0xff]
    %v157 = vld [vmem:[%s1 + $0x188] sm:$0xff]
    %v158 = vld [vmem:[%s1 + $0x190] sm:$0xff]
    %v159 = vld [vmem:[%s1 + $0x198] sm:$0xff]
    %v160 = vld [vmem:[%s1 + $0x1a0] sm:$0xff]
    %v161 = vld [vmem:[%s1 + $0x1a8] sm:$0xff]
    %v162 = vld [vmem:[%s1 + $0x1b0] sm:$0xff]
    %v163 = vld [vmem:[%s1 + $0x1b8] sm:$0xff]
    %v164 = vld [vmem:[%s1 + $0x1c0] sm:$0xff]
    %v165 = vld [vmem:[%s1 + $0x1c8] sm:$0xff]
    %v166 = vld [vmem:[%s1 + $0x1d0] sm:$0xff]
    %v167 = vld [vmem:[%s1 + $0x1d8] sm:$0xff]
    %v168 = vld [vmem:[%s1 + $0x1e0] sm:$0xff]
    %v169 = vld [vmem:[%s1 + $0x1e8] sm:$0xff]
    %v170 = vld [vmem:[%s1 + $0x1f0] sm:$0xff]
    %v171 = vld [vmem:[%s1 + $0x1f8] sm:$0xff]
    %v172 = vld [vmem:[%s1 + $0x200] sm:$0xff]
    %v173 = vld [vmem:[%s1 + $0x208] sm:$0xff]
    %v174 = vld [vmem:[%s1 + $0x210] sm:$0xff]
    %v175 = vld [vmem:[%s1 + $0x218] sm:$0xff]
    %v176 = vld [vmem:[%s1 + $0x220] sm:$0xff]
    %v177 = vld [vmem:[%s1 + $0x228] sm:$0xff]
    %v178 = vld [vmem:[%s1 + $0x230] sm:$0xff]
    %v179 = vld [vmem:[%s1 + $0x238] sm:$0xff]
    %vm180 = vcmask 523264
    %v182 = vsel %vm180, %v32, 0
    %v185 = vsel %vm180, %v37, 0
    %v188 = vsel %vm180, %v42, 0
    %v191 = vsel %vm180, %v47, 0
    %v194 = vsel %vm180, %v52, 0
    %v197 = vsel %vm180, %v57, 0
    %v200 = vsel %vm180, %v62, 0
    %v203 = vsel %vm180, %v67, 0
    %v206 = vsel %vm180, %v72, 0
    %v209 = vsel %vm180, %v77, 0
    %v212 = vsel %vm180, %v82, 0
    %v215 = vsel %vm180, %v87, 0
    %v218 = vsel %vm180, %v92, 0
    %v221 = vsel %vm180, %v97, 0
    %v224 = vsel %vm180, %v102, 0
    %v227 = vsel %vm180, %v107, 0
    %229 = vmatprep.subr.mxu0 0.0
    %230 = vmatpush1.msra.mxu0 %v108
    %231 = vmatprep.subr.mxu0 0.0
    %232 = vmatpush1.msra.mxu0 %v109
    %233 = vmatprep.subr.mxu0 0.0
    %234 = vmatpush1.msra.mxu0 %v110
    %235 = vmatprep.subr.mxu0 0.0
    %236 = vmatpush1.msra.mxu0 %v111
    %237 = vmatprep.subr.mxu0 0.0
    %238 = vmatpush1.msra.mxu0 %v112
    %239 = vmatprep.subr.mxu0 0.0
    %240 = vmatpush1.msra.mxu0 %v113
    %241 = vmatprep.subr.mxu0 0.0
    %242 = vmatpush1.msra.mxu0 %v114
    %243 = vmatprep.subr.mxu0 0.0
    %244 = vmatpush1.msra.mxu0 %v115
    %245 = vmatprep.subr.mxu0 0.0
    %246 = vmatpush1.msra.mxu0 %v116
    %247 = vmatprep.subr.mxu0 0.0
    %248 = vmatpush1.msra.mxu0 %v117
    %249 = vmatprep.subr.mxu0 0.0
    %250 = vmatpush1.msra.mxu0 %v118
    %251 = vmatprep.subr.mxu0 0.0
    %252 = vmatpush1.msra.mxu0 %v119
    %253 = vmatprep.subr.mxu0 0.0
    %254 = vmatpush1.msra.mxu0 %v120
    %255 = vmatprep.subr.mxu0 0.0
    %256 = vmatpush1.msra.mxu0 %v121
    %257 = vmatprep.subr.mxu0 0.0
    %258 = vmatpush1.msra.mxu0 %v122
    %259 = vmatprep.subr.mxu0 0.0
    %260 = vmatpush1.msra.mxu0 %v123
    %261 = vmatprep.subr.mxu0 0.0
    %262 = vmatpush1.msra.mxu0 %v124
    %263 = vmatprep.subr.mxu0 0.0
    %264 = vmatpush1.msra.mxu0 %v125
    %265 = vmatprep.subr.mxu0 0.0
    %266 = vmatpush1.msra.mxu0 %v126
    %267 = vmatprep.subr.mxu0 0.0
    %268 = vmatpush1.msra.mxu0 %v127
    %269 = vmatprep.subr.mxu0 0.0
    %270 = vmatpush1.msra.mxu0 %v128
    %271 = vmatprep.subr.mxu0 0.0
    %272 = vmatpush1.msra.mxu0 %v129
    %273 = vmatprep.subr.mxu0 0.0
    %274 = vmatpush1.msra.mxu0 %v130
    %275 = vmatprep.subr.mxu0 0.0
    %276 = vmatpush1.msra.mxu0 %v131
    %277 = vmatprep.subr.mxu0 0.0
    %278 = vmatpush1.msra.mxu0 %v132
    %279 = vmatprep.subr.mxu0 0.0
    %280 = vmatpush1.msra.mxu0 %v133
    %281 = vmatprep.subr.mxu0 0.0
    %282 = vmatpush1.msra.mxu0 %v134
    %283 = vmatprep.subr.mxu0 0.0
    %284 = vmatpush1.msra.mxu0 %v135
    %285 = vmatprep.subr.mxu0 0.0
    %286 = vmatpush1.msra.mxu0 %v136
    %287 = vmatprep.subr.mxu0 0.0
    %288 = vmatpush1.msra.mxu0 %v137
    %289 = vmatprep.subr.mxu0 0.0
    %290 = vmatpush1.msra.mxu0 %v138
    %291 = vmatprep.subr.mxu0 0.0
    %292 = vmatpush1.msra.mxu0 %v139
    %293 = vmatprep.mubr.f32.mxu0 %v29
    %294 = vmatmul.mubr.f32.gmra.mrb[0].mxu0 %v28
    %v295 = vpop.f32.mrb[0].mxu0
    %v296 = vadd.f32 0.0, %v295
    %v297 = vpop.f32.mrb[0].mxu0
    %298 = vmatprep.mubr.f32.mxu0 %v34
    %299 = vmatmul.mubr.f32.gmra.mrb[0].mxu0 %v33
    %v300 = vpop.f32.mrb[0].mxu0
    %v301 = vadd.f32 0.0, %v300
    %v302 = vpop.f32.mrb[0].mxu0
    %303 = vmatprep.mubr.f32.mxu0 %v39
    %304 = vmatmul.mubr.f32.gmra.mrb[0].mxu0 %v38
    %v305 = vpop.f32.mrb[0].mxu0
    %v306 = vadd.f32 0.0, %v305
    %v307 = vpop.f32.mrb[0].mxu0
    %308 = vmatprep.mubr.f32.mxu0 %v44
    %309 = vmatmul.mubr.f32.gmra.mrb[0].mxu0 %v43
    %v310 = vpop.f32.mrb[0].mxu0
    %v311 = vadd.f32 0.0, %v310
    %v312 = vpop.f32.mrb[0].mxu0
    %313 = vmatprep.mubr.f32.mxu0 %v49
    %314 = vmatmul.mubr.f32.gmra.mrb[0].mxu0 %v48
    %v315 = vpop.f32.mrb[0].mxu0
    %v316 = vadd.f32 0.0, %v315
    %v317 = vpop.f32.mrb[0].mxu0
    %318 = vmatprep.mubr.f32.mxu0 %v54
    %319 = vmatmul.mubr.f32.gmra.mrb[0].mxu0 %v53
    %v320 = vpop.f32.mrb[0].mxu0
    %v321 = vadd.f32 0.0, %v320
    %v322 = vpop.f32.mrb[0].mxu0
    %323 = vmatprep.mubr.f32.mxu0 %v59
    %324 = vmatmul.mubr.f32.gmra.mrb[0].mxu0 %v58
    %v325 = vpop.f32.mrb[0].mxu0
    %v326 = vadd.f32 0.0, %v325
    %v327 = vpop.f32.mrb[0].mxu0
    %328 = vmatprep.mubr.f32.mxu0 %v64
    %329 = vmatmul.mubr.f32.gmra.mrb[0].mxu0 %v63
    %v330 = vpop.f32.mrb[0].mxu0
    %v331 = vadd.f32 0.0, %v330
    %v332 = vpop.f32.mrb[0].mxu0
    %333 = vmatprep.mubr.f32.mxu0 %v69
    %334 = vmatmul.mubr.f32.gmra.mrb[0].mxu0 %v68
    %v335 = vpop.f32.mrb[0].mxu0
    %v336 = vadd.f32 0.0, %v335
    %v337 = vpop.f32.mrb[0].mxu0
    %338 = vmatprep.mubr.f32.mxu0 %v74
    %339 = vmatmul.mubr.f32.gmra.mrb[0].mxu0 %v73
    %v340 = vpop.f32.mrb[0].mxu0
    %v341 = vadd.f32 0.0, %v340
    %v342 = vpop.f32.mrb[0].mxu0
    %343 = vmatprep.mubr.f32.mxu0 %v79
    %344 = vmatmul.mubr.f32.gmra.mrb[0].mxu0 %v78
    %v345 = vpop.f32.mrb[0].mxu0
    %v346 = vadd.f32 0.0, %v345
    %v347 = vpop.f32.mrb[0].mxu0
    %348 = vmatprep.mubr.f32.mxu0 %v84
    %349 = vmatmul.mubr.f32.gmra.mrb[0].mxu0 %v83
    %v350 = vpop.f32.mrb[0].mxu0
    %v351 = vadd.f32 0.0, %v350
    %v352 = vpop.f32.mrb[0].mxu0
    %353 = vmatprep.mubr.f32.mxu0 %v89
    %354 = vmatmul.mubr.f32.gmra.mrb[0].mxu0 %v88
    %v355 = vpop.f32.mrb[0].mxu0
    %v356 = vadd.f32 0.0, %v355
    %v357 = vpop.f32.mrb[0].mxu0
    %358 = vmatprep.mubr.f32.mxu0 %v94
    %359 = vmatmul.mubr.f32.gmra.mrb[0].mxu0 %v93
    %v360 = vpop.f32.mrb[0].mxu0
    %v361 = vadd.f32 0.0, %v360
    %v362 = vpop.f32.mrb[0].mxu0
    %363 = vmatprep.mubr.f32.mxu0 %v99
    %364 = vmatmul.mubr.f32.gmra.mrb[0].mxu0 %v98
    %v365 = vpop.f32.mrb[0].mxu0
    %v366 = vadd.f32 0.0, %v365
    %v367 = vpop.f32.mrb[0].mxu0
    %368 = vmatprep.mubr.f32.mxu0 %v104
    %369 = vmatmul.mubr.f32.gmra.mrb[0].mxu0 %v103
    %v370 = vpop.f32.mrb[0].mxu0
    %v371 = vadd.f32 0.0, %v370
    %v372 = vpop.f32.mrb[0].mxu0
    %373 = vdwg.mxu0
    %374 = vmatprep.subr.mxu0 0.0
    %375 = vmatpush1.msra.mxu0 %v140
    %376 = vmatprep.subr.mxu0 0.0
    %377 = vmatpush1.msra.mxu0 %v141
    %378 = vmatprep.subr.mxu0 0.0
    %379 = vmatpush1.msra.mxu0 %v142
    %380 = vmatprep.subr.mxu0 0.0
    %381 = vmatpush1.msra.mxu0 %v143
    %382 = vmatprep.subr.mxu0 0.0
    %383 = vmatpush1.msra.mxu0 %v144
    %384 = vmatprep.subr.mxu0 0.0
    %385 = vmatpush1.msra.mxu0 %v145
    %386 = vmatprep.subr.mxu0 0.0
    %387 = vmatpush1.msra.mxu0 %v146
    %388 = vmatprep.subr.mxu0 0.0
    %389 = vmatpush1.msra.mxu0 %v147
    %390 = vmatprep.subr.mxu0 0.0
    %391 = vmatpush1.msra.mxu0 %v148
    %392 = vmatprep.subr.mxu0 0.0
    %393 = vmatpush1.msra.mxu0 %v149
    %394 = vmatprep.subr.mxu0 0.0
    %395 = vmatpush1.msra.mxu0 %v150
    %396 = vmatprep.subr.mxu0 0.0
    %397 = vmatpush1.msra.mxu0 %v151
    %398 = vmatprep.subr.mxu0 0.0
    %399 = vmatpush1.msra.mxu0 %v152
    %400 = vmatprep.subr.mxu0 0.0
    %401 = vmatpush1.msra.mxu0 %v153
    %402 = vmatprep.subr.mxu0 0.0
    %403 = vmatpush1.msra.mxu0 %v154
    %404 = vmatprep.subr.mxu0 0.0
    %405 = vmatpush1.msra.mxu0 %v155
    %406 = vmatprep.subr.mxu0 0.0
    %407 = vmatpush1.msra.mxu0 %v156
    %408 = vmatprep.subr.mxu0 0.0
    %409 = vmatpush1.msra.mxu0 %v157
    %410 = vmatprep.subr.mxu0 0.0
    %411 = vmatpush1.msra.mxu0 %v158
    %412 = vmatprep.subr.mxu0 0.0
    %413 = vmatpush1.msra.mxu0 %v159
    %414 = vmatprep.subr.mxu0 0.0
    %415 = vmatpush1.msra.mxu0 %v160
    %416 = vmatprep.subr.mxu0 0.0
    %417 = vmatpush1.msra.mxu0 %v161
    %418 = vmatprep.subr.mxu0 0.0
    %419 = vmatpush1.msra.mxu0 %v162
    %420 = vmatprep.subr.mxu0 0.0
    %421 = vmatpush1.msra.mxu0 %v163
    %422 = vmatprep.subr.mxu0 0.0
    %423 = vmatpush1.msra.mxu0 %v164
    %424 = vmatprep.subr.mxu0 0.0
    %425 = vmatpush1.msra.mxu0 %v165
    %426 = vmatprep.subr.mxu0 0.0
    %427 = vmatpush1.msra.mxu0 %v166
    %428 = vmatprep.subr.mxu0 0.0
    %429 = vmatpush1.msra.mxu0 %v167
    %430 = vmatprep.subr.mxu0 0.0
    %431 = vmatpush1.msra.mxu0 %v168
    %432 = vmatprep.subr.mxu0 0.0
    %433 = vmatpush1.msra.mxu0 %v169
    %434 = vmatprep.subr.mxu0 0.0
    %435 = vmatpush1.msra.mxu0 %v170
    %436 = vmatprep.subr.mxu0 0.0
    %437 = vmatpush1.msra.mxu0 %v171
    %438 = vmatprep.mubr.f32.mxu0 %v31
    %439 = vmatmul.mubr.f32.gmra.mrb[0].mxu0 %v30
    %v440 = vpop.f32.mrb[0].mxu0
    %v441 = vadd.f32 %v296, %v440
    %v442 = vpop.f32.mrb[0].mxu0
    %443 = vmatprep.mubr.f32.mxu0 %v36
    %444 = vmatmul.mubr.f32.gmra.mrb[0].mxu0 %v35
    %v445 = vpop.f32.mrb[0].mxu0
    %v446 = vadd.f32 %v301, %v445
    %v447 = vpop.f32.mrb[0].mxu0
    %448 = vmatprep.mubr.f32.mxu0 %v41
    %449 = vmatmul.mubr.f32.gmra.mrb[0].mxu0 %v40
    %v450 = vpop.f32.mrb[0].mxu0
    %v451 = vadd.f32 %v306, %v450
    %v452 = vpop.f32.mrb[0].mxu0
    %453 = vmatprep.mubr.f32.mxu0 %v46
    %454 = vmatmul.mubr.f32.gmra.mrb[0].mxu0 %v45
    %v455 = vpop.f32.mrb[0].mxu0
    %v456 = vadd.f32 %v311, %v455
    %v457 = vpop.f32.mrb[0].mxu0
    %458 = vmatprep.mubr.f32.mxu0 %v51
    %459 = vmatmul.mubr.f32.gmra.mrb[0].mxu0 %v50
    %v460 = vpop.f32.mrb[0].mxu0
    %v461 = vadd.f32 %v316, %v460
    %v462 = vpop.f32.mrb[0].mxu0
    %463 = vmatprep.mubr.f32.mxu0 %v56
    %464 = vmatmul.mubr.f32.gmra.mrb[0].mxu0 %v55
    %v465 = vpop.f32.mrb[0].mxu0
    %v466 = vadd.f32 %v321, %v465
    %v467 = vpop.f32.mrb[0].mxu0
    %468 = vmatprep.mubr.f32.mxu0 %v61
    %469 = vmatmul.mubr.f32.gmra.mrb[0].mxu0 %v60
    %v470 = vpop.f32.mrb[0].mxu0
    %v471 = vadd.f32 %v326, %v470
    %v472 = vpop.f32.mrb[0].mxu0
    %473 = vmatprep.mubr.f32.mxu0 %v66
    %474 = vmatmul.mubr.f32.gmra.mrb[0].mxu0 %v65
    %v475 = vpop.f32.mrb[0].mxu0
    %v476 = vadd.f32 %v331, %v475
    %v477 = vpop.f32.mrb[0].mxu0
    %478 = vmatprep.mubr.f32.mxu0 %v71
    %479 = vmatmul.mubr.f32.gmra.mrb[0].mxu0 %v70
    %v480 = vpop.f32.mrb[0].mxu0
    %v481 = vadd.f32 %v336, %v480
    %v482 = vpop.f32.mrb[0].mxu0
    %483 = vmatprep.mubr.f32.mxu0 %v76
    %484 = vmatmul.mubr.f32.gmra.mrb[0].mxu0 %v75
    %v485 = vpop.f32.mrb[0].mxu0
    %v486 = vadd.f32 %v341, %v485
    %v487 = vpop.f32.mrb[0].mxu0
    %488 = vmatprep.mubr.f32.mxu0 %v81
    %489 = vmatmul.mubr.f32.gmra.mrb[0].mxu0 %v80
    %v490 = vpop.f32.mrb[0].mxu0
    %v491 = vadd.f32 %v346, %v490
    %v492 = vpop.f32.mrb[0].mxu0
    %493 = vmatprep.mubr.f32.mxu0 %v86
    %494 = vmatmul.mubr.f32.gmra.mrb[0].mxu0 %v85
    %v495 = vpop.f32.mrb[0].mxu0
    %v496 = vadd.f32 %v351, %v495
    %v497 = vpop.f32.mrb[0].mxu0
    %498 = vmatprep.mubr.f32.mxu0 %v91
    %499 = vmatmul.mubr.f32.gmra.mrb[0].mxu0 %v90
    %v500 = vpop.f32.mrb[0].mxu0
    %v501 = vadd.f32 %v356, %v500
    %v502 = vpop.f32.mrb[0].mxu0
    %503 = vmatprep.mubr.f32.mxu0 %v96
    %504 = vmatmul.mubr.f32.gmra.mrb[0].mxu0 %v95
    %v505 = vpop.f32.mrb[0].mxu0
    %v506 = vadd.f32 %v361, %v505
    %v507 = vpop.f32.mrb[0].mxu0
    %508 = vmatprep.mubr.f32.mxu0 %v101
    %509 = vmatmul.mubr.f32.gmra.mrb[0].mxu0 %v100
    %v510 = vpop.f32.mrb[0].mxu0
    %v511 = vadd.f32 %v366, %v510
    %v512 = vpop.f32.mrb[0].mxu0
    %513 = vmatprep.mubr.f32.mxu0 %v106
    %514 = vmatmul.mubr.f32.gmra.mrb[0].mxu0 %v105
    %v515 = vpop.f32.mrb[0].mxu0
    %v516 = vadd.f32 %v371, %v515
    %v517 = vpop.f32.mrb[0].mxu0
    %518 = vdwg.mxu0
    %519 = vmatprep.subr.mxu0 0.0
    %520 = vmatpush1.msra.mxu0 %v172
    %521 = vmatprep.subr.mxu0 0.0
    %522 = vmatpush1.msra.mxu0 %v173
    %523 = vmatprep.subr.mxu0 0.0
    %524 = vmatpush1.msra.mxu0 %v174
    %525 = vmatprep.subr.mxu0 0.0
    %526 = vmatpush1.msra.mxu0 %v175
    %527 = vmatprep.subr.mxu0 0.0
    %528 = vmatpush1.msra.mxu0 %v176
    %529 = vmatprep.subr.mxu0 0.0
    %530 = vmatpush1.msra.mxu0 %v177
    %531 = vmatprep.subr.mxu0 0.0
    %532 = vmatpush1.msra.mxu0 %v178
    %533 = vmatprep.subr.mxu0 0.0
    %534 = vmatpush1.msra.mxu0 %v179
    %535 = vmatprep.subr.mxu0 0.0
    %536 = vmatpush1.msra.mxu0 0.0
    %537 = vmatprep.subr.mxu0 0.0
    %538 = vmatpush1.msra.mxu0 0.0
    %539 = vmatprep.subr.mxu0 0.0
    %540 = vmatpush1.msra.mxu0 0.0
    %541 = vmatprep.subr.mxu0 0.0
    %542 = vmatpush1.msra.mxu0 0.0
    %543 = vmatprep.subr.mxu0 0.0
    %544 = vmatpush1.msra.mxu0 0.0
    %545 = vmatprep.subr.mxu0 0.0
    %546 = vmatpush1.msra.mxu0 0.0
    %547 = vmatprep.subr.mxu0 0.0
    %548 = vmatpush1.msra.mxu0 0.0
    %549 = vmatprep.subr.mxu0 0.0
    %550 = vmatpush1.msra.mxu0 0.0
    %551 = vmatprep.subr.mxu0 0.0
    %552 = vmatpush1.msra.mxu0 0.0
    %553 = vmatprep.subr.mxu0 0.0
    %554 = vmatpush1.msra.mxu0 0.0
    %555 = vmatprep.subr.mxu0 0.0
    %556 = vmatpush1.msra.mxu0 0.0
    %557 = vmatprep.subr.mxu0 0.0
    %558 = vmatpush1.msra.mxu0 0.0
    %559 = vmatprep.subr.mxu0 0.0
    %560 = vmatpush1.msra.mxu0 0.0
    %561 = vmatprep.subr.mxu0 0.0
    %562 = vmatpush1.msra.mxu0 0.0
    %563 = vmatprep.subr.mxu0 0.0
    %564 = vmatpush1.msra.mxu0 0.0
    %565 = vmatprep.subr.mxu0 0.0
    %566 = vmatpush1.msra.mxu0 0.0
    %567 = vmatprep.subr.mxu0 0.0
    %568 = vmatpush1.msra.mxu0 0.0
    %569 = vmatprep.subr.mxu0 0.0
    %570 = vmatpush1.msra.mxu0 0.0
    %571 = vmatprep.subr.mxu0 0.0
    %572 = vmatpush1.msra.mxu0 0.0
    %573 = vmatprep.subr.mxu0 0.0
    %574 = vmatpush1.msra.mxu0 0.0
    %575 = vmatprep.subr.mxu0 0.0
    %576 = vmatpush1.msra.mxu0 0.0
    %577 = vmatprep.subr.mxu0 0.0
    %578 = vmatpush1.msra.mxu0 0.0
    %579 = vmatprep.subr.mxu0 0.0
    %580 = vmatpush1.msra.mxu0 0.0
    %581 = vmatprep.subr.mxu0 0.0
    %582 = vmatpush1.msra.mxu0 0.0
    %583 = vmatprep.mubr.f32.mxu0 0.0
    %584 = vmatmul.mubr.f32.gmra.mrb[0].mxu0 %v182
    %v585 = vpop.f32.mrb[0].mxu0
    %v586 = vadd.f32 %v441, %v585
    %v587 = vpop.f32.mrb[0].mxu0
    %588 = vmatprep.mubr.f32.mxu0 0.0
    %589 = vmatmul.mubr.f32.gmra.mrb[0].mxu0 %v185
    %v590 = vpop.f32.mrb[0].mxu0
    %v591 = vadd.f32 %v446, %v590
    %v592 = vpop.f32.mrb[0].mxu0
    %593 = vmatprep.mubr.f32.mxu0 0.0
    %594 = vmatmul.mubr.f32.gmra.mrb[0].mxu0 %v188
    %v595 = vpop.f32.mrb[0].mxu0
    %v596 = vadd.f32 %v451, %v595
    %v597 = vpop.f32.mrb[0].mxu0
    %598 = vmatprep.mubr.f32.mxu0 0.0
    %599 = vmatmul.mubr.f32.gmra.mrb[0].mxu0 %v191
    %v600 = vpop.f32.mrb[0].mxu0
    %v601 = vadd.f32 %v456, %v600
    %v602 = vpop.f32.mrb[0].mxu0
    %603 = vmatprep.mubr.f32.mxu0 0.0
    %604 = vmatmul.mubr.f32.gmra.mrb[0].mxu0 %v194
    %v605 = vpop.f32.mrb[0].mxu0
    %v606 = vadd.f32 %v461, %v605
    %v607 = vpop.f32.mrb[0].mxu0
    %608 = vmatprep.mubr.f32.mxu0 0.0
    %609 = vmatmul.mubr.f32.gmra.mrb[0].mxu0 %v197
    %v610 = vpop.f32.mrb[0].mxu0
    %v611 = vadd.f32 %v466, %v610
    %v612 = vpop.f32.mrb[0].mxu0
    %613 = vmatprep.mubr.f32.mxu0 0.0
    %614 = vmatmul.mubr.f32.gmra.mrb[0].mxu0 %v200
    %v615 = vpop.f32.mrb[0].mxu0
    %v616 = vadd.f32 %v471, %v615
    %v617 = vpop.f32.mrb[0].mxu0
    %618 = vmatprep.mubr.f32.mxu0 0.0
    %619 = vmatmul.mubr.f32.gmra.mrb[0].mxu0 %v203
    %v620 = vpop.f32.mrb[0].mxu0
    %v621 = vadd.f32 %v476, %v620
    %v622 = vpop.f32.mrb[0].mxu0
    %623 = vmatprep.mubr.f32.mxu0 0.0
    %624 = vmatmul.mubr.f32.gmra.mrb[0].mxu0 %v206
    %v625 = vpop.f32.mrb[0].mxu0
    %v626 = vadd.f32 %v481, %v625
    %v627 = vpop.f32.mrb[0].mxu0
    %628 = vmatprep.mubr.f32.mxu0 0.0
    %629 = vmatmul.mubr.f32.gmra.mrb[0].mxu0 %v209
    %v630 = vpop.f32.mrb[0].mxu0
    %v631 = vadd.f32 %v486, %v630
    %v632 = vpop.f32.mrb[0].mxu0
    %633 = vmatprep.mubr.f32.mxu0 0.0
    %634 = vmatmul.mubr.f32.gmra.mrb[0].mxu0 %v212
    %v635 = vpop.f32.mrb[0].mxu0
    %v636 = vadd.f32 %v491, %v635
    %v637 = vpop.f32.mrb[0].mxu0
    %638 = vmatprep.mubr.f32.mxu0 0.0
    %639 = vmatmul.mubr.f32.gmra.mrb[0].mxu0 %v215
    %v640 = vpop.f32.mrb[0].mxu0
    %v641 = vadd.f32 %v496, %v640
    %v642 = vpop.f32.mrb[0].mxu0
    %643 = vmatprep.mubr.f32.mxu0 0.0
    %644 = vmatmul.mubr.f32.gmra.mrb[0].mxu0 %v218
    %v645 = vpop.f32.mrb[0].mxu0
    %v646 = vadd.f32 %v501, %v645
    %v647 = vpop.f32.mrb[0].mxu0
    %648 = vmatprep.mubr.f32.mxu0 0.0
    %649 = vmatmul.mubr.f32.gmra.mrb[0].mxu0 %v221
    %v650 = vpop.f32.mrb[0].mxu0
    %v651 = vadd.f32 %v506, %v650
    %v652 = vpop.f32.mrb[0].mxu0
    %653 = vmatprep.mubr.f32.mxu0 0.0
    %654 = vmatmul.mubr.f32.gmra.mrb[0].mxu0 %v224
    %v655 = vpop.f32.mrb[0].mxu0
    %v656 = vadd.f32 %v511, %v655
    %v657 = vpop.f32.mrb[0].mxu0
    %658 = vmatprep.mubr.f32.mxu0 0.0
    %659 = vmatmul.mubr.f32.gmra.mrb[0].mxu0 %v227
    %v660 = vpop.f32.mrb[0].mxu0
    %v661 = vadd.f32 %v516, %v660
    %v662 = vpop.f32.mrb[0].mxu0
    %663 = vdwg.mxu0
    %664 = vxpose.xlu0.b32.start [1/16] %v586, 128
    %665 = vxpose.xlu0.b32.cont [2/16] %v591, 128
    %666 = vxpose.xlu0.b32.cont [3/16] %v596, 128
    %667 = vxpose.xlu0.b32.cont [4/16] %v601, 128
    %668 = vxpose.xlu0.b32.cont [5/16] %v606, 128
    %669 = vxpose.xlu0.b32.cont [6/16] %v611, 128
    %670 = vxpose.xlu0.b32.cont [7/16] %v616, 128
    %671 = vxpose.xlu0.b32.cont [8/16] %v621, 128
    %672 = vxpose.xlu0.b32.cont [9/16] %v626, 128
    %673 = vxpose.xlu0.b32.cont [10/16] %v631, 128
    %674 = vxpose.xlu0.b32.cont [11/16] %v636, 128
    %675 = vxpose.xlu0.b32.cont [12/16] %v641, 128
    %676 = vxpose.xlu0.b32.cont [13/16] %v646, 128
    %677 = vxpose.xlu0.b32.cont [14/16] %v651, 128
    %678 = vxpose.xlu0.b32.cont [15/16] %v656, 128
    %679 = vxpose.xlu0.b32.end [16/16] %v661, 128
    %v680 = vpop.trf.xlu0
    %v681 = vpop.trf.xlu0
    %v682 = vpop.trf.xlu0
    %v683 = vpop.trf.xlu0
    %v684 = vpop.trf.xlu0
    %v685 = vpop.trf.xlu0
    %v686 = vpop.trf.xlu0
    %v687 = vpop.trf.xlu0
    %v688 = vpop.trf.xlu0
    %v689 = vpop.trf.xlu0
    %v690 = vpop.trf.xlu0
    %v691 = vpop.trf.xlu0
    %v692 = vpop.trf.xlu0
    %v693 = vpop.trf.xlu0
    %v694 = vpop.trf.xlu0
    %v695 = vpop.trf.xlu0
    %v696 = vld [vmem:[%s2] sm:$0xff]
    %v697 = vld [vmem:[%s2 + $0x8] sm:$0xff]
    %v698 = vld [vmem:[%s2 + $0x10] sm:$0xff]
    %v699 = vld [vmem:[%s2 + $0x18] sm:$0xff]
    %v700 = vld [vmem:[%s3] sm:$0xff]
    %v701 = vld [vmem:[%s3 + $0x8] sm:$0xff]
    %v702 = vadd.f32 %v680, 0.0
    %v703 = vadd.f32 %v681, 0.0
    %v704 = vmul.f32 %v702, %v702
    %v705 = vmul.f32 %v703, %v703
    %v706 = vadd.f32 %v704, %v705
    %v707 = vrot.slane %v706, 4
    %v708 = vadd.f32 %v706, %v707
    %v709 = vrot.slane %v708, 2
    %v710 = vadd.f32 %v708, %v709
    %v711 = vrot.slane %v710, 1
    %v712 = vadd.f32 %v710, %v711
    %v713 = vadd.f32 %v712, 1e-12
    %v714 = vrcp.pop %v713
    %vm715 = vcmask 130048
    %v717 = vsel %vm715, %v696, 0
    %v720 = vsel %vm715, %v697, 0
    %v723 = vsel %vm715, %v698, 0
    %v726 = vsel %vm715, %v699, 0
    %728 = vmatprep.subr.mxu0 0.0
    %729 = vmatpush1.msra.mxu0 %v702
    %730 = vmatprep.subr.mxu0 0.0
    %731 = vmatpush1.msra.mxu0 %v703
    %732 = vmatprep.subr.mxu0 0.0
    %733 = vmatpush1.msra.mxu0 0.0
    %734 = vmatprep.subr.mxu0 0.0
    %735 = vmatpush1.msra.mxu0 0.0
    %736 = vmatprep.subr.mxu0 0.0
    %737 = vmatpush1.msra.mxu0 0.0
    %738 = vmatprep.subr.mxu0 0.0
    %739 = vmatpush1.msra.mxu0 0.0
    %740 = vmatprep.subr.mxu0 0.0
    %741 = vmatpush1.msra.mxu0 0.0
    %742 = vmatprep.subr.mxu0 0.0
    %743 = vmatpush1.msra.mxu0 0.0
    %744 = vmatprep.subr.mxu0 0.0
    %745 = vmatpush1.msra.mxu0 0.0
    %746 = vmatprep.subr.mxu0 0.0
    %747 = vmatpush1.msra.mxu0 0.0
    %748 = vmatprep.subr.mxu0 0.0
    %749 = vmatpush1.msra.mxu0 0.0
    %750 = vmatprep.subr.mxu0 0.0
    %751 = vmatpush1.msra.mxu0 0.0
    %752 = vmatprep.subr.mxu0 0.0
    %753 = vmatpush1.msra.mxu0 0.0
    %754 = vmatprep.subr.mxu0 0.0
    %755 = vmatpush1.msra.mxu0 0.0
    %756 = vmatprep.subr.mxu0 0.0
    %757 = vmatpush1.msra.mxu0 0.0
    %758 = vmatprep.subr.mxu0 0.0
    %759 = vmatpush1.msra.mxu0 0.0
    %760 = vmatprep.subr.mxu0 0.0
    %761 = vmatpush1.msra.mxu0 0.0
    %762 = vmatprep.subr.mxu0 0.0
    %763 = vmatpush1.msra.mxu0 0.0
    %764 = vmatprep.subr.mxu0 0.0
    %765 = vmatpush1.msra.mxu0 0.0
    %766 = vmatprep.subr.mxu0 0.0
    %767 = vmatpush1.msra.mxu0 0.0
    %768 = vmatprep.subr.mxu0 0.0
    %769 = vmatpush1.msra.mxu0 0.0
    %770 = vmatprep.subr.mxu0 0.0
    %771 = vmatpush1.msra.mxu0 0.0
    %772 = vmatprep.subr.mxu0 0.0
    %773 = vmatpush1.msra.mxu0 0.0
    %774 = vmatprep.subr.mxu0 0.0
    %775 = vmatpush1.msra.mxu0 0.0
    %776 = vmatprep.subr.mxu0 0.0
    %777 = vmatpush1.msra.mxu0 0.0
    %778 = vmatprep.subr.mxu0 0.0
    %779 = vmatpush1.msra.mxu0 0.0
    %780 = vmatprep.subr.mxu0 0.0
    %781 = vmatpush1.msra.mxu0 0.0
    %782 = vmatprep.subr.mxu0 0.0
    %783 = vmatpush1.msra.mxu0 0.0
    %784 = vmatprep.subr.mxu0 0.0
    %785 = vmatpush1.msra.mxu0 0.0
    %786 = vmatprep.subr.mxu0 0.0
    %787 = vmatpush1.msra.mxu0 0.0
    %788 = vmatprep.subr.mxu0 0.0
    %789 = vmatpush1.msra.mxu0 0.0
    %790 = vmatprep.subr.mxu0 0.0
    %791 = vmatpush1.msra.mxu0 0.0
    %792 = vmatprep.mubr.f32.mxu0 0.0
    %793 = vmatmul.mubr.f32.gmra.mrb[0].mxu0 %v717
    %v794 = vpop.f32.mrb[0].mxu0
    %v795 = vadd.f32 0.0, %v794
    %v796 = vpop.f32.mrb[0].mxu0
    %797 = vmatprep.mubr.f32.mxu0 0.0
    %798 = vmatmul.mubr.f32.gmra.mrb[0].mxu0 %v720
    %v799 = vpop.f32.mrb[0].mxu0
    %v800 = vadd.f32 0.0, %v799
    %v801 = vpop.f32.mrb[0].mxu0
    %802 = vmatprep.mubr.f32.mxu0 0.0
    %803 = vmatmul.mubr.f32.gmra.mrb[0].mxu0 %v723
    %v804 = vpop.f32.mrb[0].mxu0
    %v805 = vadd.f32 0.0, %v804
    %v806 = vpop.f32.mrb[0].mxu0
    %807 = vmatprep.mubr.f32.mxu0 0.0
    %808 = vmatmul.mubr.f32.gmra.mrb[0].mxu0 %v726
    %v809 = vpop.f32.mrb[0].mxu0
    %v810 = vadd.f32 0.0, %v809
    %v811 = vpop.f32.mrb[0].mxu0
    %812 = vdwg.mxu0
    %v813 = vmul.f32 %v795, %v795
    %v814 = vmul.f32 %v800, %v800
    %v815 = vmul.f32 %v805, %v805
    %v816 = vmul.f32 %v810, %v810
    %v817 = vadd.f32 %v813, %v815
    %v818 = vadd.f32 %v814, %v816
    %v820 = vsel %vm715, %v700, 0
    %v823 = vsel %vm715, %v701, 0
    %825 = vmatprep.subr.mxu0 0.0
    %826 = vmatpush1.msra.mxu0 %v817
    %827 = vmatprep.subr.mxu0 0.0
    %828 = vmatpush1.msra.mxu0 %v818
    %829 = vmatprep.subr.mxu0 0.0
    %830 = vmatpush1.msra.mxu0 0.0
    %831 = vmatprep.subr.mxu0 0.0
    %832 = vmatpush1.msra.mxu0 0.0
    %833 = vmatprep.subr.mxu0 0.0
    %834 = vmatpush1.msra.mxu0 0.0
    %835 = vmatprep.subr.mxu0 0.0
    %836 = vmatpush1.msra.mxu0 0.0
    %837 = vmatprep.subr.mxu0 0.0
    %838 = vmatpush1.msra.mxu0 0.0
    %839 = vmatprep.subr.mxu0 0.0
    %840 = vmatpush1.msra.mxu0 0.0
    %841 = vmatprep.subr.mxu0 0.0
    %842 = vmatpush1.msra.mxu0 0.0
    %843 = vmatprep.subr.mxu0 0.0
    %844 = vmatpush1.msra.mxu0 0.0
    %845 = vmatprep.subr.mxu0 0.0
    %846 = vmatpush1.msra.mxu0 0.0
    %847 = vmatprep.subr.mxu0 0.0
    %848 = vmatpush1.msra.mxu0 0.0
    %849 = vmatprep.subr.mxu0 0.0
    %850 = vmatpush1.msra.mxu0 0.0
    %851 = vmatprep.subr.mxu0 0.0
    %852 = vmatpush1.msra.mxu0 0.0
    %853 = vmatprep.subr.mxu0 0.0
    %854 = vmatpush1.msra.mxu0 0.0
    %855 = vmatprep.subr.mxu0 0.0
    %856 = vmatpush1.msra.mxu0 0.0
    %857 = vmatprep.subr.mxu0 0.0
    %858 = vmatpush1.msra.mxu0 0.0
    %859 = vmatprep.subr.mxu0 0.0
    %860 = vmatpush1.msra.mxu0 0.0
    %861 = vmatprep.subr.mxu0 0.0
    %862 = vmatpush1.msra.mxu0 0.0
    %863 = vmatprep.subr.mxu0 0.0
    %864 = vmatpush1.msra.mxu0 0.0
    %865 = vmatprep.subr.mxu0 0.0
    %866 = vmatpush1.msra.mxu0 0.0
    %867 = vmatprep.subr.mxu0 0.0
    %868 = vmatpush1.msra.mxu0 0.0
    %869 = vmatprep.subr.mxu0 0.0
    %870 = vmatpush1.msra.mxu0 0.0
    %871 = vmatprep.subr.mxu0 0.0
    %872 = vmatpush1.msra.mxu0 0.0
    %873 = vmatprep.subr.mxu0 0.0
    %874 = vmatpush1.msra.mxu0 0.0
    %875 = vmatprep.subr.mxu0 0.0
    %876 = vmatpush1.msra.mxu0 0.0
    %877 = vmatprep.subr.mxu0 0.0
    %878 = vmatpush1.msra.mxu0 0.0
    %879 = vmatprep.subr.mxu0 0.0
    %880 = vmatpush1.msra.mxu0 0.0
    %881 = vmatprep.subr.mxu0 0.0
    %882 = vmatpush1.msra.mxu0 0.0
    %883 = vmatprep.subr.mxu0 0.0
    %884 = vmatpush1.msra.mxu0 0.0
    %885 = vmatprep.subr.mxu0 0.0
    %886 = vmatpush1.msra.mxu0 0.0
    %887 = vmatprep.subr.mxu0 0.0
    %888 = vmatpush1.msra.mxu0 0.0
    %889 = vmatprep.mubr.f32.mxu0 0.0
    %890 = vmatmul.mubr.f32.gmra.mrb[0].mxu0 %v820
    %v891 = vpop.f32.mrb[0].mxu0
    %v892 = vadd.f32 0.0, %v891
    %v893 = vpop.f32.mrb[0].mxu0
    %894 = vmatprep.mubr.f32.mxu0 0.0
    %895 = vmatmul.mubr.f32.gmra.mrb[0].mxu0 %v823
    %v896 = vpop.f32.mrb[0].mxu0
    %v897 = vadd.f32 0.0, %v896
    %v898 = vpop.f32.mrb[0].mxu0
    %899 = vdwg.mxu0
    %v900 = vmul.f32 %v892, %v714
    %v901 = vmul.f32 %v897, %v714
    %v902 = vadd.f32 %v900, %v680
    %v903 = vadd.f32 %v901, %v681
    %v904 = vmul.f32 %v902, %v902
    %v905 = vmul.f32 %v903, %v903
    %v906 = vadd.f32 %v904, %v905
    %v907 = vrot.slane %v906, 4
    %v908 = vadd.f32 %v906, %v907
    %v909 = vrot.slane %v908, 2
    %v910 = vadd.f32 %v908, %v909
    %v911 = vrot.slane %v910, 1
    %v912 = vadd.f32 %v910, %v911
    %v913 = vadd.f32 %v912, 1e-12
    %v914 = vrcp.pop %v913
    %915 = vmatprep.subr.mxu0 0.0
    %916 = vmatpush1.msra.mxu0 %v902
    %917 = vmatprep.subr.mxu0 0.0
    %918 = vmatpush1.msra.mxu0 %v903
    %919 = vmatprep.subr.mxu0 0.0
    %920 = vmatpush1.msra.mxu0 0.0
    %921 = vmatprep.subr.mxu0 0.0
    %922 = vmatpush1.msra.mxu0 0.0
    %923 = vmatprep.subr.mxu0 0.0
    %924 = vmatpush1.msra.mxu0 0.0
    %925 = vmatprep.subr.mxu0 0.0
    %926 = vmatpush1.msra.mxu0 0.0
    %927 = vmatprep.subr.mxu0 0.0
    %928 = vmatpush1.msra.mxu0 0.0
    %929 = vmatprep.subr.mxu0 0.0
    %930 = vmatpush1.msra.mxu0 0.0
    %931 = vmatprep.subr.mxu0 0.0
    %932 = vmatpush1.msra.mxu0 0.0
    %933 = vmatprep.subr.mxu0 0.0
    %934 = vmatpush1.msra.mxu0 0.0
    %935 = vmatprep.subr.mxu0 0.0
    %936 = vmatpush1.msra.mxu0 0.0
    %937 = vmatprep.subr.mxu0 0.0
    %938 = vmatpush1.msra.mxu0 0.0
    %939 = vmatprep.subr.mxu0 0.0
    %940 = vmatpush1.msra.mxu0 0.0
    %941 = vmatprep.subr.mxu0 0.0
    %942 = vmatpush1.msra.mxu0 0.0
    %943 = vmatprep.subr.mxu0 0.0
    %944 = vmatpush1.msra.mxu0 0.0
    %945 = vmatprep.subr.mxu0 0.0
    %946 = vmatpush1.msra.mxu0 0.0
    %947 = vmatprep.subr.mxu0 0.0
    %948 = vmatpush1.msra.mxu0 0.0
    %949 = vmatprep.subr.mxu0 0.0
    %950 = vmatpush1.msra.mxu0 0.0
    %951 = vmatprep.subr.mxu0 0.0
    %952 = vmatpush1.msra.mxu0 0.0
    %953 = vmatprep.subr.mxu0 0.0
    %954 = vmatpush1.msra.mxu0 0.0
    %955 = vmatprep.subr.mxu0 0.0
    %956 = vmatpush1.msra.mxu0 0.0
    %957 = vmatprep.subr.mxu0 0.0
    %958 = vmatpush1.msra.mxu0 0.0
    %959 = vmatprep.subr.mxu0 0.0
    %960 = vmatpush1.msra.mxu0 0.0
    %961 = vmatprep.subr.mxu0 0.0
    %962 = vmatpush1.msra.mxu0 0.0
    %963 = vmatprep.subr.mxu0 0.0
    %964 = vmatpush1.msra.mxu0 0.0
    %965 = vmatprep.subr.mxu0 0.0
    %966 = vmatpush1.msra.mxu0 0.0
    %967 = vmatprep.subr.mxu0 0.0
    %968 = vmatpush1.msra.mxu0 0.0
    %969 = vmatprep.subr.mxu0 0.0
    %970 = vmatpush1.msra.mxu0 0.0
    %971 = vmatprep.subr.mxu0 0.0
    %972 = vmatpush1.msra.mxu0 0.0
    %973 = vmatprep.subr.mxu0 0.0
    %974 = vmatpush1.msra.mxu0 0.0
    %975 = vmatprep.subr.mxu0 0.0
    %976 = vmatpush1.msra.mxu0 0.0
    %977 = vmatprep.subr.mxu0 0.0
    %978 = vmatpush1.msra.mxu0 0.0
    %979 = vmatprep.mubr.f32.mxu0 0.0
    %980 = vmatmul.mubr.f32.gmra.mrb[0].mxu0 %v717
    %v981 = vpop.f32.mrb[0].mxu0
    %v982 = vadd.f32 0.0, %v981
    %v983 = vpop.f32.mrb[0].mxu0
    %984 = vmatprep.mubr.f32.mxu0 0.0
    %985 = vmatmul.mubr.f32.gmra.mrb[0].mxu0 %v720
    %v986 = vpop.f32.mrb[0].mxu0
    %v987 = vadd.f32 0.0, %v986
    %v988 = vpop.f32.mrb[0].mxu0
    %989 = vmatprep.mubr.f32.mxu0 0.0
    %990 = vmatmul.mubr.f32.gmra.mrb[0].mxu0 %v723
    %v991 = vpop.f32.mrb[0].mxu0
    %v992 = vadd.f32 0.0, %v991
    %v993 = vpop.f32.mrb[0].mxu0
    %994 = vmatprep.mubr.f32.mxu0 0.0
    %995 = vmatmul.mubr.f32.gmra.mrb[0].mxu0 %v726
    %v996 = vpop.f32.mrb[0].mxu0
    %v997 = vadd.f32 0.0, %v996
    %v998 = vpop.f32.mrb[0].mxu0
    %999 = vdwg.mxu0
    %v1000 = vmul.f32 %v982, %v982
    %v1001 = vmul.f32 %v987, %v987
    %v1002 = vmul.f32 %v992, %v992
    %v1003 = vmul.f32 %v997, %v997
    %v1004 = vadd.f32 %v1000, %v1002
    %v1005 = vadd.f32 %v1001, %v1003
    %1006 = vmatprep.subr.mxu0 0.0
    %1007 = vmatpush1.msra.mxu0 %v1004
    %1008 = vmatprep.subr.mxu0 0.0
    %1009 = vmatpush1.msra.mxu0 %v1005
    %1010 = vmatprep.subr.mxu0 0.0
    %1011 = vmatpush1.msra.mxu0 0.0
    %1012 = vmatprep.subr.mxu0 0.0
    %1013 = vmatpush1.msra.mxu0 0.0
    %1014 = vmatprep.subr.mxu0 0.0
    %1015 = vmatpush1.msra.mxu0 0.0
    %1016 = vmatprep.subr.mxu0 0.0
    %1017 = vmatpush1.msra.mxu0 0.0
    %1018 = vmatprep.subr.mxu0 0.0
    %1019 = vmatpush1.msra.mxu0 0.0
    %1020 = vmatprep.subr.mxu0 0.0
    %1021 = vmatpush1.msra.mxu0 0.0
    %1022 = vmatprep.subr.mxu0 0.0
    %1023 = vmatpush1.msra.mxu0 0.0
    %1024 = vmatprep.subr.mxu0 0.0
    %1025 = vmatpush1.msra.mxu0 0.0
    %1026 = vmatprep.subr.mxu0 0.0
    %1027 = vmatpush1.msra.mxu0 0.0
    %1028 = vmatprep.subr.mxu0 0.0
    %1029 = vmatpush1.msra.mxu0 0.0
    %1030 = vmatprep.subr.mxu0 0.0
    %1031 = vmatpush1.msra.mxu0 0.0
    %1032 = vmatprep.subr.mxu0 0.0
    %1033 = vmatpush1.msra.mxu0 0.0
    %1034 = vmatprep.subr.mxu0 0.0
    %1035 = vmatpush1.msra.mxu0 0.0
    %1036 = vmatprep.subr.mxu0 0.0
    %1037 = vmatpush1.msra.mxu0 0.0
    %1038 = vmatprep.subr.mxu0 0.0
    %1039 = vmatpush1.msra.mxu0 0.0
    %1040 = vmatprep.subr.mxu0 0.0
    %1041 = vmatpush1.msra.mxu0 0.0
    %1042 = vmatprep.subr.mxu0 0.0
    %1043 = vmatpush1.msra.mxu0 0.0
    %1044 = vmatprep.subr.mxu0 0.0
    %1045 = vmatpush1.msra.mxu0 0.0
    %1046 = vmatprep.subr.mxu0 0.0
    %1047 = vmatpush1.msra.mxu0 0.0
    %1048 = vmatprep.subr.mxu0 0.0
    %1049 = vmatpush1.msra.mxu0 0.0
    %1050 = vmatprep.subr.mxu0 0.0
    %1051 = vmatpush1.msra.mxu0 0.0
    %1052 = vmatprep.subr.mxu0 0.0
    %1053 = vmatpush1.msra.mxu0 0.0
    %1054 = vmatprep.subr.mxu0 0.0
    %1055 = vmatpush1.msra.mxu0 0.0
    %1056 = vmatprep.subr.mxu0 0.0
    %1057 = vmatpush1.msra.mxu0 0.0
    %1058 = vmatprep.subr.mxu0 0.0
    %1059 = vmatpush1.msra.mxu0 0.0
    %1060 = vmatprep.subr.mxu0 0.0
    %1061 = vmatpush1.msra.mxu0 0.0
    %1062 = vmatprep.subr.mxu0 0.0
    %1063 = vmatpush1.msra.mxu0 0.0
    %1064 = vmatprep.subr.mxu0 0.0
    %1065 = vmatpush1.msra.mxu0 0.0
    %1066 = vmatprep.subr.mxu0 0.0
    %1067 = vmatpush1.msra.mxu0 0.0
    %1068 = vmatprep.subr.mxu0 0.0
    %1069 = vmatpush1.msra.mxu0 0.0
    %1070 = vmatprep.mubr.f32.mxu0 0.0
    %1071 = vmatmul.mubr.f32.gmra.mrb[0].mxu0 %v820
    %v1072 = vpop.f32.mrb[0].mxu0
    %v1073 = vadd.f32 0.0, %v1072
    %v1074 = vpop.f32.mrb[0].mxu0
    %1075 = vmatprep.mubr.f32.mxu0 0.0
    %1076 = vmatmul.mubr.f32.gmra.mrb[0].mxu0 %v823
    %v1077 = vpop.f32.mrb[0].mxu0
    %v1078 = vadd.f32 0.0, %v1077
    %v1079 = vpop.f32.mrb[0].mxu0
    %1080 = vdwg.mxu0
    %v1081 = vmul.f32 %v1073, %v914
    %v1082 = vmul.f32 %v1078, %v914
    %v1083 = vadd.f32 %v1081, %v680
    %v1084 = vadd.f32 %v1082, %v681
    %v1085 = vmul.f32 %v1083, %v1083
    %v1086 = vmul.f32 %v1084, %v1084
    %v1087 = vadd.f32 %v1085, %v1086
    %v1088 = vrot.slane %v1087, 4
    %v1089 = vadd.f32 %v1087, %v1088
    %v1090 = vrot.slane %v1089, 2
    %v1091 = vadd.f32 %v1089, %v1090
    %v1092 = vrot.slane %v1091, 1
    %v1093 = vadd.f32 %v1091, %v1092
    %v1094 = vadd.f32 %v1093, 1e-12
    %v1095 = vrcp.pop %v1094
    %1096 = vmatprep.subr.mxu0 0.0
    %1097 = vmatpush1.msra.mxu0 %v1083
    %1098 = vmatprep.subr.mxu0 0.0
    %1099 = vmatpush1.msra.mxu0 %v1084
    %1100 = vmatprep.subr.mxu0 0.0
    %1101 = vmatpush1.msra.mxu0 0.0
    %1102 = vmatprep.subr.mxu0 0.0
    %1103 = vmatpush1.msra.mxu0 0.0
    %1104 = vmatprep.subr.mxu0 0.0
    %1105 = vmatpush1.msra.mxu0 0.0
    %1106 = vmatprep.subr.mxu0 0.0
    %1107 = vmatpush1.msra.mxu0 0.0
    %1108 = vmatprep.subr.mxu0 0.0
    %1109 = vmatpush1.msra.mxu0 0.0
    %1110 = vmatprep.subr.mxu0 0.0
    %1111 = vmatpush1.msra.mxu0 0.0
    %1112 = vmatprep.subr.mxu0 0.0
    %1113 = vmatpush1.msra.mxu0 0.0
    %1114 = vmatprep.subr.mxu0 0.0
    %1115 = vmatpush1.msra.mxu0 0.0
    %1116 = vmatprep.subr.mxu0 0.0
    %1117 = vmatpush1.msra.mxu0 0.0
    %1118 = vmatprep.subr.mxu0 0.0
    %1119 = vmatpush1.msra.mxu0 0.0
    %1120 = vmatprep.subr.mxu0 0.0
    %1121 = vmatpush1.msra.mxu0 0.0
    %1122 = vmatprep.subr.mxu0 0.0
    %1123 = vmatpush1.msra.mxu0 0.0
    %1124 = vmatprep.subr.mxu0 0.0
    %1125 = vmatpush1.msra.mxu0 0.0
    %1126 = vmatprep.subr.mxu0 0.0
    %1127 = vmatpush1.msra.mxu0 0.0
    %1128 = vmatprep.subr.mxu0 0.0
    %1129 = vmatpush1.msra.mxu0 0.0
    %1130 = vmatprep.subr.mxu0 0.0
    %1131 = vmatpush1.msra.mxu0 0.0
    %1132 = vmatprep.subr.mxu0 0.0
    %1133 = vmatpush1.msra.mxu0 0.0
    %1134 = vmatprep.subr.mxu0 0.0
    %1135 = vmatpush1.msra.mxu0 0.0
    %1136 = vmatprep.subr.mxu0 0.0
    %1137 = vmatpush1.msra.mxu0 0.0
    %1138 = vmatprep.subr.mxu0 0.0
    %1139 = vmatpush1.msra.mxu0 0.0
    %1140 = vmatprep.subr.mxu0 0.0
    %1141 = vmatpush1.msra.mxu0 0.0
    %1142 = vmatprep.subr.mxu0 0.0
    %1143 = vmatpush1.msra.mxu0 0.0
    %1144 = vmatprep.subr.mxu0 0.0
    %1145 = vmatpush1.msra.mxu0 0.0
    %1146 = vmatprep.subr.mxu0 0.0
    %1147 = vmatpush1.msra.mxu0 0.0
    %1148 = vmatprep.subr.mxu0 0.0
    %1149 = vmatpush1.msra.mxu0 0.0
    %1150 = vmatprep.subr.mxu0 0.0
    %1151 = vmatpush1.msra.mxu0 0.0
    %1152 = vmatprep.subr.mxu0 0.0
    %1153 = vmatpush1.msra.mxu0 0.0
    %1154 = vmatprep.subr.mxu0 0.0
    %1155 = vmatpush1.msra.mxu0 0.0
    %1156 = vmatprep.subr.mxu0 0.0
    %1157 = vmatpush1.msra.mxu0 0.0
    %1158 = vmatprep.subr.mxu0 0.0
    %1159 = vmatpush1.msra.mxu0 0.0
    %1160 = vmatprep.mubr.f32.mxu0 0.0
    %1161 = vmatmul.mubr.f32.gmra.mrb[0].mxu0 %v717
    %v1162 = vpop.f32.mrb[0].mxu0
    %v1163 = vadd.f32 0.0, %v1162
    %v1164 = vpop.f32.mrb[0].mxu0
    %1165 = vmatprep.mubr.f32.mxu0 0.0
    %1166 = vmatmul.mubr.f32.gmra.mrb[0].mxu0 %v720
    %v1167 = vpop.f32.mrb[0].mxu0
    %v1168 = vadd.f32 0.0, %v1167
    %v1169 = vpop.f32.mrb[0].mxu0
    %1170 = vmatprep.mubr.f32.mxu0 0.0
    %1171 = vmatmul.mubr.f32.gmra.mrb[0].mxu0 %v723
    %v1172 = vpop.f32.mrb[0].mxu0
    %v1173 = vadd.f32 0.0, %v1172
    %v1174 = vpop.f32.mrb[0].mxu0
    %1175 = vmatprep.mubr.f32.mxu0 0.0
    %1176 = vmatmul.mubr.f32.gmra.mrb[0].mxu0 %v726
    %v1177 = vpop.f32.mrb[0].mxu0
    %v1178 = vadd.f32 0.0, %v1177
    %v1179 = vpop.f32.mrb[0].mxu0
    %1180 = vdwg.mxu0
    %v1181 = vmul.f32 %v1163, %v1163
    %v1182 = vmul.f32 %v1168, %v1168
    %v1183 = vmul.f32 %v1173, %v1173
    %v1184 = vmul.f32 %v1178, %v1178
    %v1185 = vadd.f32 %v1181, %v1183
    %v1186 = vadd.f32 %v1182, %v1184
    %1187 = vmatprep.subr.mxu0 0.0
    %1188 = vmatpush1.msra.mxu0 %v1185
    %1189 = vmatprep.subr.mxu0 0.0
    %1190 = vmatpush1.msra.mxu0 %v1186
    %1191 = vmatprep.subr.mxu0 0.0
    %1192 = vmatpush1.msra.mxu0 0.0
    %1193 = vmatprep.subr.mxu0 0.0
    %1194 = vmatpush1.msra.mxu0 0.0
    %1195 = vmatprep.subr.mxu0 0.0
    %1196 = vmatpush1.msra.mxu0 0.0
    %1197 = vmatprep.subr.mxu0 0.0
    %1198 = vmatpush1.msra.mxu0 0.0
    %1199 = vmatprep.subr.mxu0 0.0
    %1200 = vmatpush1.msra.mxu0 0.0
    %1201 = vmatprep.subr.mxu0 0.0
    %1202 = vmatpush1.msra.mxu0 0.0
    %1203 = vmatprep.subr.mxu0 0.0
    %1204 = vmatpush1.msra.mxu0 0.0
    %1205 = vmatprep.subr.mxu0 0.0
    %1206 = vmatpush1.msra.mxu0 0.0
    %1207 = vmatprep.subr.mxu0 0.0
    %1208 = vmatpush1.msra.mxu0 0.0
    %1209 = vmatprep.subr.mxu0 0.0
    %1210 = vmatpush1.msra.mxu0 0.0
    %1211 = vmatprep.subr.mxu0 0.0
    %1212 = vmatpush1.msra.mxu0 0.0
    %1213 = vmatprep.subr.mxu0 0.0
    %1214 = vmatpush1.msra.mxu0 0.0
    %1215 = vmatprep.subr.mxu0 0.0
    %1216 = vmatpush1.msra.mxu0 0.0
    %1217 = vmatprep.subr.mxu0 0.0
    %1218 = vmatpush1.msra.mxu0 0.0
    %1219 = vmatprep.subr.mxu0 0.0
    %1220 = vmatpush1.msra.mxu0 0.0
    %1221 = vmatprep.subr.mxu0 0.0
    %1222 = vmatpush1.msra.mxu0 0.0
    %1223 = vmatprep.subr.mxu0 0.0
    %1224 = vmatpush1.msra.mxu0 0.0
    %1225 = vmatprep.subr.mxu0 0.0
    %1226 = vmatpush1.msra.mxu0 0.0
    %1227 = vmatprep.subr.mxu0 0.0
    %1228 = vmatpush1.msra.mxu0 0.0
    %1229 = vmatprep.subr.mxu0 0.0
    %1230 = vmatpush1.msra.mxu0 0.0
    %1231 = vmatprep.subr.mxu0 0.0
    %1232 = vmatpush1.msra.mxu0 0.0
    %1233 = vmatprep.subr.mxu0 0.0
    %1234 = vmatpush1.msra.mxu0 0.0
    %1235 = vmatprep.subr.mxu0 0.0
    %1236 = vmatpush1.msra.mxu0 0.0
    %1237 = vmatprep.subr.mxu0 0.0
    %1238 = vmatpush1.msra.mxu0 0.0
    %1239 = vmatprep.subr.mxu0 0.0
    %1240 = vmatpush1.msra.mxu0 0.0
    %1241 = vmatprep.subr.mxu0 0.0
    %1242 = vmatpush1.msra.mxu0 0.0
    %1243 = vmatprep.subr.mxu0 0.0
    %1244 = vmatpush1.msra.mxu0 0.0
    %1245 = vmatprep.subr.mxu0 0.0
    %1246 = vmatpush1.msra.mxu0 0.0
    %1247 = vmatprep.subr.mxu0 0.0
    %1248 = vmatpush1.msra.mxu0 0.0
    %1249 = vmatprep.subr.mxu0 0.0
    %1250 = vmatpush1.msra.mxu0 0.0
    %1251 = vmatprep.mubr.f32.mxu0 0.0
    %1252 = vmatmul.mubr.f32.gmra.mrb[0].mxu0 %v820
    %v1253 = vpop.f32.mrb[0].mxu0
    %v1254 = vadd.f32 0.0, %v1253
    %v1255 = vpop.f32.mrb[0].mxu0
    %1256 = vmatprep.mubr.f32.mxu0 0.0
    %1257 = vmatmul.mubr.f32.gmra.mrb[0].mxu0 %v823
    %v1258 = vpop.f32.mrb[0].mxu0
    %v1259 = vadd.f32 0.0, %v1258
    %v1260 = vpop.f32.mrb[0].mxu0
    %1261 = vdwg.mxu0
    %v1262 = vmul.f32 %v1254, %v1095
    %v1263 = vmul.f32 %v1259, %v1095
    %1264 = vst [vmem:[#allocation2] sm:$0xff] %v1262
    %1265 = vst [vmem:[#allocation2 + $0x8] sm:$0xff] %v1263
    %v1266 = vadd.f32 %v1262, %v680
    %v1267 = vadd.f32 %v1263, %v681
    %v1268 = vmul.f32 %v1266, %v1266
    %v1269 = vmul.f32 %v1267, %v1267
    %v1270 = vadd.f32 %v1268, %v1269
    %v1271 = vrot.slane %v1270, 4
    %v1272 = vadd.f32 %v1270, %v1271
    %v1273 = vrot.slane %v1272, 2
    %v1274 = vadd.f32 %v1272, %v1273
    %v1275 = vrot.slane %v1274, 1
    %v1276 = vadd.f32 %v1274, %v1275
    %v1277 = vadd.f32 %v1276, 1e-12
    %v1278 = vrcp.pop %v1277
    %1279 = vmatprep.subr.mxu0 0.0
    %1280 = vmatpush1.msra.mxu0 %v1266
    %1281 = vmatprep.subr.mxu0 0.0
    %1282 = vmatpush1.msra.mxu0 %v1267
    %1283 = vmatprep.subr.mxu0 0.0
    %1284 = vmatpush1.msra.mxu0 0.0
    %1285 = vmatprep.subr.mxu0 0.0
    %1286 = vmatpush1.msra.mxu0 0.0
    %1287 = vmatprep.subr.mxu0 0.0
    %1288 = vmatpush1.msra.mxu0 0.0
    %1289 = vmatprep.subr.mxu0 0.0
    %1290 = vmatpush1.msra.mxu0 0.0
    %1291 = vmatprep.subr.mxu0 0.0
    %1292 = vmatpush1.msra.mxu0 0.0
    %1293 = vmatprep.subr.mxu0 0.0
    %1294 = vmatpush1.msra.mxu0 0.0
    %1295 = vmatprep.subr.mxu0 0.0
    %1296 = vmatpush1.msra.mxu0 0.0
    %1297 = vmatprep.subr.mxu0 0.0
    %1298 = vmatpush1.msra.mxu0 0.0
    %1299 = vmatprep.subr.mxu0 0.0
    %1300 = vmatpush1.msra.mxu0 0.0
    %1301 = vmatprep.subr.mxu0 0.0
    %1302 = vmatpush1.msra.mxu0 0.0
    %1303 = vmatprep.subr.mxu0 0.0
    %1304 = vmatpush1.msra.mxu0 0.0
    %1305 = vmatprep.subr.mxu0 0.0
    %1306 = vmatpush1.msra.mxu0 0.0
    %1307 = vmatprep.subr.mxu0 0.0
    %1308 = vmatpush1.msra.mxu0 0.0
    %1309 = vmatprep.subr.mxu0 0.0
    %1310 = vmatpush1.msra.mxu0 0.0
    %1311 = vmatprep.subr.mxu0 0.0
    %1312 = vmatpush1.msra.mxu0 0.0
    %1313 = vmatprep.subr.mxu0 0.0
    %1314 = vmatpush1.msra.mxu0 0.0
    %1315 = vmatprep.subr.mxu0 0.0
    %1316 = vmatpush1.msra.mxu0 0.0
    %1317 = vmatprep.subr.mxu0 0.0
    %1318 = vmatpush1.msra.mxu0 0.0
    %1319 = vmatprep.subr.mxu0 0.0
    %1320 = vmatpush1.msra.mxu0 0.0
    %1321 = vmatprep.subr.mxu0 0.0
    %1322 = vmatpush1.msra.mxu0 0.0
    %1323 = vmatprep.subr.mxu0 0.0
    %1324 = vmatpush1.msra.mxu0 0.0
    %1325 = vmatprep.subr.mxu0 0.0
    %1326 = vmatpush1.msra.mxu0 0.0
    %1327 = vmatprep.subr.mxu0 0.0
    %1328 = vmatpush1.msra.mxu0 0.0
    %1329 = vmatprep.subr.mxu0 0.0
    %1330 = vmatpush1.msra.mxu0 0.0
    %1331 = vmatprep.subr.mxu0 0.0
    %1332 = vmatpush1.msra.mxu0 0.0
    %1333 = vmatprep.subr.mxu0 0.0
    %1334 = vmatpush1.msra.mxu0 0.0
    %1335 = vmatprep.subr.mxu0 0.0
    %1336 = vmatpush1.msra.mxu0 0.0
    %1337 = vmatprep.subr.mxu0 0.0
    %1338 = vmatpush1.msra.mxu0 0.0
    %1339 = vmatprep.subr.mxu0 0.0
    %1340 = vmatpush1.msra.mxu0 0.0
    %1341 = vmatprep.subr.mxu0 0.0
    %1342 = vmatpush1.msra.mxu0 0.0
    %1343 = vmatprep.mubr.f32.mxu0 0.0
    %1344 = vmatmul.mubr.f32.gmra.mrb[0].mxu0 %v717
    %v1345 = vpop.f32.mrb[0].mxu0
    %v1346 = vadd.f32 0.0, %v1345
    %v1347 = vpop.f32.mrb[0].mxu0
    %1348 = vmatprep.mubr.f32.mxu0 0.0
    %1349 = vmatmul.mubr.f32.gmra.mrb[0].mxu0 %v720
    %v1350 = vpop.f32.mrb[0].mxu0
    %v1351 = vadd.f32 0.0, %v1350
    %v1352 = vpop.f32.mrb[0].mxu0
    %1353 = vmatprep.mubr.f32.mxu0 0.0
    %1354 = vmatmul.mubr.f32.gmra.mrb[0].mxu0 %v723
    %v1355 = vpop.f32.mrb[0].mxu0
    %v1356 = vadd.f32 0.0, %v1355
    %v1357 = vpop.f32.mrb[0].mxu0
    %1358 = vmatprep.mubr.f32.mxu0 0.0
    %1359 = vmatmul.mubr.f32.gmra.mrb[0].mxu0 %v726
    %v1360 = vpop.f32.mrb[0].mxu0
    %v1361 = vadd.f32 0.0, %v1360
    %v1362 = vpop.f32.mrb[0].mxu0
    %1363 = vdwg.mxu0
    %v1364 = vmul.f32 %v1346, %v1346
    %v1365 = vmul.f32 %v1351, %v1351
    %v1366 = vmul.f32 %v1356, %v1356
    %v1367 = vmul.f32 %v1361, %v1361
    %v1368 = vadd.f32 %v1364, %v1366
    %v1369 = vadd.f32 %v1365, %v1367
    %1370 = vmatprep.subr.mxu0 0.0
    %1371 = vmatpush1.msra.mxu0 %v1368
    %1372 = vmatprep.subr.mxu0 0.0
    %1373 = vmatpush1.msra.mxu0 %v1369
    %1374 = vmatprep.subr.mxu0 0.0
    %1375 = vmatpush1.msra.mxu0 0.0
    %1376 = vmatprep.subr.mxu0 0.0
    %1377 = vmatpush1.msra.mxu0 0.0
    %1378 = vmatprep.subr.mxu0 0.0
    %1379 = vmatpush1.msra.mxu0 0.0
    %1380 = vmatprep.subr.mxu0 0.0
    %1381 = vmatpush1.msra.mxu0 0.0
    %1382 = vmatprep.subr.mxu0 0.0
    %1383 = vmatpush1.msra.mxu0 0.0
    %1384 = vmatprep.subr.mxu0 0.0
    %1385 = vmatpush1.msra.mxu0 0.0
    %1386 = vmatprep.subr.mxu0 0.0
    %1387 = vmatpush1.msra.mxu0 0.0
    %1388 = vmatprep.subr.mxu0 0.0
    %1389 = vmatpush1.msra.mxu0 0.0
    %1390 = vmatprep.subr.mxu0 0.0
    %1391 = vmatpush1.msra.mxu0 0.0
    %1392 = vmatprep.subr.mxu0 0.0
    %1393 = vmatpush1.msra.mxu0 0.0
    %1394 = vmatprep.subr.mxu0 0.0
    %1395 = vmatpush1.msra.mxu0 0.0
    %1396 = vmatprep.subr.mxu0 0.0
    %1397 = vmatpush1.msra.mxu0 0.0
    %1398 = vmatprep.subr.mxu0 0.0
    %1399 = vmatpush1.msra.mxu0 0.0
    %1400 = vmatprep.subr.mxu0 0.0
    %1401 = vmatpush1.msra.mxu0 0.0
    %1402 = vmatprep.subr.mxu0 0.0
    %1403 = vmatpush1.msra.mxu0 0.0
    %1404 = vmatprep.subr.mxu0 0.0
    %1405 = vmatpush1.msra.mxu0 0.0
    %1406 = vmatprep.subr.mxu0 0.0
    %1407 = vmatpush1.msra.mxu0 0.0
    %1408 = vmatprep.subr.mxu0 0.0
    %1409 = vmatpush1.msra.mxu0 0.0
    %1410 = vmatprep.subr.mxu0 0.0
    %1411 = vmatpush1.msra.mxu0 0.0
    %1412 = vmatprep.subr.mxu0 0.0
    %1413 = vmatpush1.msra.mxu0 0.0
    %1414 = vmatprep.subr.mxu0 0.0
    %1415 = vmatpush1.msra.mxu0 0.0
    %1416 = vmatprep.subr.mxu0 0.0
    %1417 = vmatpush1.msra.mxu0 0.0
    %1418 = vmatprep.subr.mxu0 0.0
    %1419 = vmatpush1.msra.mxu0 0.0
    %1420 = vmatprep.subr.mxu0 0.0
    %1421 = vmatpush1.msra.mxu0 0.0
    %1422 = vmatprep.subr.mxu0 0.0
    %1423 = vmatpush1.msra.mxu0 0.0
    %1424 = vmatprep.subr.mxu0 0.0
    %1425 = vmatpush1.msra.mxu0 0.0
    %1426 = vmatprep.subr.mxu0 0.0
    %1427 = vmatpush1.msra.mxu0 0.0
    %1428 = vmatprep.subr.mxu0 0.0
    %1429 = vmatpush1.msra.mxu0 0.0
    %1430 = vmatprep.subr.mxu0 0.0
    %1431 = vmatpush1.msra.mxu0 0.0
    %1432 = vmatprep.subr.mxu0 0.0
    %1433 = vmatpush1.msra.mxu0 0.0
    %1434 = vmatprep.mubr.f32.mxu0 0.0
    %1435 = vmatmul.mubr.f32.gmra.mrb[0].mxu0 %v820
    %v1436 = vpop.f32.mrb[0].mxu0
    %v1437 = vadd.f32 0.0, %v1436
    %v1438 = vpop.f32.mrb[0].mxu0
    %1439 = vmatprep.mubr.f32.mxu0 0.0
    %1440 = vmatmul.mubr.f32.gmra.mrb[0].mxu0 %v823
    %v1441 = vpop.f32.mrb[0].mxu0
    %v1442 = vadd.f32 0.0, %v1441
    %v1443 = vpop.f32.mrb[0].mxu0
    %1444 = vdwg.mxu0
    %v1445 = vmul.f32 %v1437, %v1278
    %v1446 = vmul.f32 %v1442, %v1278
    %1447 = vst [vmem:[#allocation4] sm:$0xff] %v1445
    %1448 = vst [vmem:[#allocation4 + $0x8] sm:$0xff] %v1446
    %v1449 = vmax.f32 %v1262, 0.0
    %v1450 = vmax.f32 %v1263, 0.0
    %v1451 = vld [vmem:[%s4] sm:$0xf]
    %v1452 = vld [vmem:[%s5] sm:$0xf]
    %1454 = vset.pattern.permute.xlu0 0
    %1455 = vperm.xlu0 %1454, %v1452
    %v1456 = vpop.permute.xlu0 %1455
    %v1459 = vsel %vm715, %v1451, 0
    %1461 = vmatprep.subr.mxu0 0.0
    %1462 = vmatpush1.msra.mxu0 %v1449
    %1463 = vmatprep.subr.mxu0 0.0
    %1464 = vmatpush1.msra.mxu0 %v1450
    %1465 = vmatprep.subr.mxu0 0.0
    %1466 = vmatpush1.msra.mxu0 0.0
    %1467 = vmatprep.subr.mxu0 0.0
    %1468 = vmatpush1.msra.mxu0 0.0
    %1469 = vmatprep.subr.mxu0 0.0
    %1470 = vmatpush1.msra.mxu0 0.0
    %1471 = vmatprep.subr.mxu0 0.0
    %1472 = vmatpush1.msra.mxu0 0.0
    %1473 = vmatprep.subr.mxu0 0.0
    %1474 = vmatpush1.msra.mxu0 0.0
    %1475 = vmatprep.subr.mxu0 0.0
    %1476 = vmatpush1.msra.mxu0 0.0
    %1477 = vmatprep.subr.mxu0 0.0
    %1478 = vmatpush1.msra.mxu0 0.0
    %1479 = vmatprep.subr.mxu0 0.0
    %1480 = vmatpush1.msra.mxu0 0.0
    %1481 = vmatprep.subr.mxu0 0.0
    %1482 = vmatpush1.msra.mxu0 0.0
    %1483 = vmatprep.subr.mxu0 0.0
    %1484 = vmatpush1.msra.mxu0 0.0
    %1485 = vmatprep.subr.mxu0 0.0
    %1486 = vmatpush1.msra.mxu0 0.0
    %1487 = vmatprep.subr.mxu0 0.0
    %1488 = vmatpush1.msra.mxu0 0.0
    %1489 = vmatprep.subr.mxu0 0.0
    %1490 = vmatpush1.msra.mxu0 0.0
    %1491 = vmatprep.subr.mxu0 0.0
    %1492 = vmatpush1.msra.mxu0 0.0
    %1493 = vmatprep.subr.mxu0 0.0
    %1494 = vmatpush1.msra.mxu0 0.0
    %1495 = vmatprep.subr.mxu0 0.0
    %1496 = vmatpush1.msra.mxu0 0.0
    %1497 = vmatprep.subr.mxu0 0.0
    %1498 = vmatpush1.msra.mxu0 0.0
    %1499 = vmatprep.subr.mxu0 0.0
    %1500 = vmatpush1.msra.mxu0 0.0
    %1501 = vmatprep.subr.mxu0 0.0
    %1502 = vmatpush1.msra.mxu0 0.0
    %1503 = vmatprep.subr.mxu0 0.0
    %1504 = vmatpush1.msra.mxu0 0.0
    %1505 = vmatprep.subr.mxu0 0.0
    %1506 = vmatpush1.msra.mxu0 0.0
    %1507 = vmatprep.subr.mxu0 0.0
    %1508 = vmatpush1.msra.mxu0 0.0
    %1509 = vmatprep.subr.mxu0 0.0
    %1510 = vmatpush1.msra.mxu0 0.0
    %1511 = vmatprep.subr.mxu0 0.0
    %1512 = vmatpush1.msra.mxu0 0.0
    %1513 = vmatprep.subr.mxu0 0.0
    %1514 = vmatpush1.msra.mxu0 0.0
    %1515 = vmatprep.subr.mxu0 0.0
    %1516 = vmatpush1.msra.mxu0 0.0
    %1517 = vmatprep.subr.mxu0 0.0
    %1518 = vmatpush1.msra.mxu0 0.0
    %1519 = vmatprep.subr.mxu0 0.0
    %1520 = vmatpush1.msra.mxu0 0.0
    %1521 = vmatprep.subr.mxu0 0.0
    %1522 = vmatpush1.msra.mxu0 0.0
    %1523 = vmatprep.subr.mxu0 0.0
    %1524 = vmatpush1.msra.mxu0 0.0
    %1525 = vmatprep.mubr.f32.mxu0 0.0
    %1526 = vmatmul.mubr.f32.gmra.mrb[0].mxu0 %v1459
    %v1527 = vpop.f32.mrb[0].mxu0
    %v1528 = vadd.f32 %v1456, %v1527
    %v1529 = vpop.f32.mrb[0].mxu0
    %1530 = vdwg.mxu0
    %1531 = vst [vmem:[#allocation6] sm:$0xf] %v1528
    // Predicated region
    $region26: #{tpu_custom_call.1} parent=1 // pred_check
      _
    $region27: #{tpu_custom_call.1} parent=1 // pred_check_branch
      %1533 = sbr.rel (0) target = $region29
    $region28: #{tpu_custom_call.1} parent=1 // pred_region
      %s1535 = ssub.s32 256, 256
      %1536 = vsyncadd [#allocation3], %s1535
      %s1537 = sshll.u32 [#allocation2], 4
      %s1538 = int_to_ptr.vmem [resolvable:$true] %s1537
      %1543 = dma.vmem_to_hbm [thread:$0]  %s1538, 256, %s6, [#allocation3], 128, 128, 8
    $region29: #{tpu_custom_call.1} parent=1 // pred_fallthru
      _
    // Predicated region
    $region30: #{tpu_custom_call.1} parent=1 // pred_check
      _
    $region31: #{tpu_custom_call.1} parent=1 // pred_check_branch
      %1545 = sbr.rel (0) target = $region33
    $region32: #{tpu_custom_call.1} parent=1 // pred_region
      %s1547 = ssub.s32 256, 256
      %1548 = vsyncadd [#allocation5], %s1547
      %s1549 = sshll.u32 [#allocation4], 4
      %s1550 = int_to_ptr.vmem [resolvable:$true] %s1549
      %1555 = dma.vmem_to_hbm [thread:$0]  %s1550, 256, %s7, [#allocation5], 128, 128, 8
    $region33: #{tpu_custom_call.1} parent=1 // pred_fallthru
      _
    // Predicated region
    $region34: #{tpu_custom_call.1} parent=1 // pred_check
      _
    $region35: #{tpu_custom_call.1} parent=1 // pred_check_branch
      %1557 = sbr.rel (0) target = $region37
    $region36: #{tpu_custom_call.1} parent=1 // pred_region
      %s1559 = ssub.s32 64, 64
      %1560 = vsyncadd [#allocation5], %s1559
      %s1562 = sshll.u32 [#allocation6], 4
      %s1563 = int_to_ptr.vmem [resolvable:$true] %s1562
      %1565 = dma.vmem_to_hbm [thread:$0]  %s1563, 64, %s8, [#allocation5]
    $region37: #{tpu_custom_call.1} parent=1 // pred_fallthru
      _
    // Predicated region
    $region38: #{tpu_custom_call.1} parent=1 // pred_check
      _
    $region39: #{tpu_custom_call.1} parent=1 // pred_check_branch
      %1567 = sbr.rel (0) target = $region41
    $region40: #{tpu_custom_call.1} parent=1 // pred_region
      %1568 = dma.done [#allocation3], 256
    $region41: #{tpu_custom_call.1} parent=1 // pred_fallthru
      _
    // Predicated region
    $region42: #{tpu_custom_call.1} parent=1 // pred_check
      _
    $region43: #{tpu_custom_call.1} parent=1 // pred_check_branch
      %1570 = sbr.rel (0) target = $region45
    $region44: #{tpu_custom_call.1} parent=1 // pred_region
      %1571 = dma.done [#allocation5], 256
    $region45: #{tpu_custom_call.1} parent=1 // pred_fallthru
      _
    // Predicated region
    $region46: #{tpu_custom_call.1} parent=1 // pred_check
      _
    $region47: #{tpu_custom_call.1} parent=1 // pred_check_branch
      %1573 = sbr.rel (0) target = $region49
    $region48: #{tpu_custom_call.1} parent=1 // pred_region
      %1574 = dma.done [#allocation5], 64
    $region49: #{tpu_custom_call.1} parent=1 // pred_fallthru
      _
    %1575 = vsyncpa [#allocation3], 1
    %1576 = vsyncpa [#allocation5], 1

</llo_original>
